<compile_context>
chip_gen: v7x
topology: tpu7x:2x2x1
jax: 0.10.0
libtpu: 0.0.40
codegen_flags: <defaults>
</compile_context>

<pallas_src>
import warnings

import jax
import jax.numpy as jnp
from jax.experimental import pallas as pl
from jax.experimental.pallas import tpu as pltpu

EPS = 1e-5

# Silence best-effort donation warnings if a buffer ever can't be reused.
warnings.filterwarnings("ignore", message=".*donat.*")


def _bn_add_relu_kernel_2d(x_ref, skip_ref, gamma_ref, beta_ref, o_ref):
    # x_ref / skip_ref / o_ref: (C_tile, HW); gamma_ref / beta_ref: (C_tile, 1)
    x = x_ref[...].astype(jnp.float32)
    inv_cnt = jnp.float32(1.0 / x.shape[1])
    mean = jnp.sum(x, axis=1, keepdims=True) * inv_cnt
    centered = x - mean                                   # two-pass (stable) stats
    var = jnp.sum(centered * centered, axis=1, keepdims=True) * inv_cnt
    scale = gamma_ref[...] * jax.lax.rsqrt(var + EPS)     # (C_tile, 1)
    skip = skip_ref[...].astype(jnp.float32)
    out = jnp.maximum(skip + centered * scale + beta_ref[...], 0.0)
    o_ref[...] = out.astype(o_ref.dtype)


def _bn_add_relu_kernel_3d(x_ref, skip_ref, gamma_ref, beta_ref, o_ref):
    # x_ref / skip_ref / o_ref: (N, C_tile, HW); gamma_ref / beta_ref: (1, C_tile, 1)
    x = x_ref[...].astype(jnp.float32)
    inv_cnt = jnp.float32(1.0 / (x.shape[0] * x.shape[2]))
    mean = jnp.sum(jnp.sum(x, axis=2, keepdims=True), axis=0, keepdims=True) * inv_cnt
    centered = x - mean
    var = jnp.sum(jnp.sum(centered * centered, axis=2, keepdims=True),
                  axis=0, keepdims=True) * inv_cnt
    scale = gamma_ref[...] * jax.lax.rsqrt(var + EPS)     # (1, C_tile, 1)
    skip = skip_ref[...].astype(jnp.float32)
    out = jnp.maximum(skip + centered * scale + beta_ref[...], 0.0)
    o_ref[...] = out.astype(o_ref.dtype)


def _chip_traits():
    """(tensorcores_per_chip, conservative scoped-VMEM budget in bytes)."""
    try:
        kind = jax.devices()[0].device_kind.lower()
    except Exception:  # pragma: no cover - defensive
        kind = ""
    is_v7 = ("v7" in kind) or ("7x" in kind)
    n_cores = 2 if is_v7 else 1
    if "v6" in kind:
        budget = 24 << 20          # 128 MiB physical, 32 MiB default scoped
    elif is_v7:
        budget = 16 << 20          # only 64 MiB physical on v7x
    else:
        budget = 14 << 20          # v5e / unknown: stay well under 16 MiB scoped
    return n_cores, budget


def _pick_c_tile(rows, c, hw, io_itemsize, n_cores, vmem_budget):
    """Largest channel tile (multiple of 8 dividing C, or C itself) whose real
    VMEM footprint (3 blocked arrays x 2 pipeline buffers + ~2 f32 temporaries
    materialized by the body) fits the budget.  On multi-TC chips, split so
    grid >= n_cores when the data volume clearly pays for extra grid steps."""
    candidates = sorted({ct for ct in range(8, c + 1, 8) if c % ct == 0} | {c})

    def footprint(ct):
        tile_elems = rows * ct * hw
        return 3 * 2 * tile_elems * io_itemsize + 2 * tile_elems * 4

    fitting = [ct for ct in candidates if footprint(ct) <= vmem_budget]
    if not fitting:
        # TODO(synk): for very large N*H*W add an inner HW grid axis (marked
        # "arbitrary", placed last) with per-channel sum/sumsq VMEM scratch and
        # a pl.when finalize instead of a single huge resident channel block.
        return candidates[0]

    ct = fitting[-1]
    total_io_bytes = 3 * rows * c * hw * io_itemsize
    if n_cores > 1 and (c // ct) < n_cores and total_io_bytes >= (4 << 20):
        split = [x for x in fitting if c // x >= n_cores]
        if split:
            ct = split[-1]
    return ct


def _pallas_bn_add_relu(x116, x103, gamma, beta):
    """relu(x103 + batchnorm(x116)) with training-mode (batch) statistics."""
    N, C, H, W = x116.shape
    HW = H * W

    n_cores, vmem_budget = _chip_traits()
    io_itemsize = jnp.dtype(x116.dtype).itemsize
    rows = 1 if N == 1 else N
    c_tile = _pick_c_tile(rows, C, HW, io_itemsize, n_cores, vmem_budget)
    grid = (C // c_tile,)

    g = gamma.astype(jnp.float32)
    b = beta.astype(jnp.float32)

    cost = pl.CostEstimate(
        flops=8 * N * C * HW,
        transcendentals=C,
        bytes_accessed=3 * N * C * HW * io_itemsize + 2 * C * 4,
    )
    cparams = pltpu.CompilerParams(
        dimension_semantics=("parallel",),
        vmem_limit_bytes=vmem_budget,
    )
    # Alias the residual buffer onto the output (only when dtypes match); the
    # enclosing jit donates x103, so no defensive copy is emitted.
    aliases = {1: 0} if x103.dtype == x116.dtype else {}

    if N == 1:
        # Free contiguous reshapes; no transposes.
        x = x116.reshape(C, HW)
        skip = x103.reshape(C, HW)
        data_spec = pl.BlockSpec((c_tile, HW), lambda c: (c, 0))
        param_spec = pl.BlockSpec((c_tile, 1), lambda c: (c, 0))
        out = pl.pallas_call(
            _bn_add_relu_kernel_2d,
            out_shape=jax.ShapeDtypeStruct((C, HW), x116.dtype),
            grid=grid,
            in_specs=[data_spec, data_spec, param_spec, param_spec],
            out_specs=data_spec,
            input_output_aliases=aliases,
            compiler_params=cparams,
            cost_estimate=cost,
        )(x, skip, g.reshape(C, 1), b.reshape(C, 1))
    else:
        x = x116.reshape(N, C, HW)
        skip = x103.reshape(N, C, HW)
        data_spec = pl.BlockSpec((N, c_tile, HW), lambda c: (0, c, 0))
        param_spec = pl.BlockSpec((1, c_tile, 1), lambda c: (0, c, 0))
        out = pl.pallas_call(
            _bn_add_relu_kernel_3d,
            out_shape=jax.ShapeDtypeStruct((N, C, HW), x116.dtype),
            grid=grid,
            in_specs=[data_spec, data_spec, param_spec, param_spec],
            out_specs=data_spec,
            input_output_aliases=aliases,
            compiler_params=cparams,
            cost_estimate=cost,
        )(x, skip, g.reshape(1, C, 1), b.reshape(1, C, 1))

    return out.reshape(N, C, H, W)


# Donate the residual so the input/output alias is real (no hidden HBM copy).
# NOTE: callers must not read x103 after this call (it is clobbered).
bn_add_relu = jax.jit(_pallas_bn_add_relu, donate_argnums=(1,))


if __name__ == "__main__":
    # Shapes taken directly from the module spec: (1, 120, 28, 28), f32.
    N, C, H, W = 1, 120, 28, 28
    key = jax.random.PRNGKey(0)
    k1, k2 = jax.random.split(key)
    x116 = jax.random.normal(k1, (N, C, H, W), dtype=jnp.float32)
    x103 = jax.random.normal(k2, (N, C, H, W), dtype=jnp.float32)

    # Deterministic synthetic BatchNorm affine parameters.
    gamma = jnp.linspace(0.5, 1.5, C, dtype=jnp.float32)
    beta = jnp.linspace(-0.1, 0.1, C, dtype=jnp.float32)

    # Pure-JAX reference (training-mode, biased-var) computed BEFORE the kernel
    # call because x103 is donated (its buffer is clobbered by the alias).
    mean = jnp.mean(x116, axis=(0, 2, 3), keepdims=True)
    var = jnp.mean((x116 - mean) ** 2, axis=(0, 2, 3), keepdims=True)
    ref = (x116 - mean) * jax.lax.rsqrt(var + EPS)
    ref = ref * gamma.reshape(1, C, 1, 1) + beta.reshape(1, C, 1, 1)
    ref = jnp.maximum(x103 + ref, 0.0)
    ref = jax.block_until_ready(ref)

    out = bn_add_relu(x116, x103, gamma, beta)
    out = jax.block_until_ready(out)

    assert jnp.allclose(out, ref, atol=1e-4, rtol=1e-4), float(
        jnp.max(jnp.abs(out - ref)))
    print("KERNEL_OK")
</pallas_src>

<mosaic_0001>
module attributes {stable_mosaic.version = 11 : i64} {
  func.func @_bn_add_relu_kernel_2d(%arg0: i32, %arg1: memref<120x784xf32, #tpu.memory_space<vmem>>, %arg2: memref<120x784xf32, #tpu.memory_space<vmem>>, %arg3: memref<120x1xf32, #tpu.memory_space<vmem>>, %arg4: memref<120x1xf32, #tpu.memory_space<vmem>>, %arg5: memref<120x784xf32, #tpu.memory_space<vmem>>) attributes {dimension_semantics = [#tpu.dimension_semantics<parallel>], iteration_bounds = array<i64: 1>, scalar_prefetch = 0 : i64, scratch_operands = 0 : i64, tpu.core_type = #tpu.core_type<tc>, window_params = [{transform_indices = @transform_0, window_bounds = array<i64: 120, 784>}, {transform_indices = @transform_1, window_bounds = array<i64: 120, 784>}, {transform_indices = @transform_2, window_bounds = array<i64: 120, 1>}, {transform_indices = @transform_3, window_bounds = array<i64: 120, 1>}, {transform_indices = @transform_4, window_bounds = array<i64: 120, 784>}]} {
    %c0 = arith.constant 0 : index
    %c0_0 = arith.constant 0 : index
    %0 = vector.load %arg1[%c0, %c0_0] : memref<120x784xf32, #tpu.memory_space<vmem>>, vector<120x784xf32>
    %cst = arith.constant dense<0.000000e+00> : vector<120xf32>
    %1 = vector.multi_reduction <add>, %0, %cst [1] : vector<120x784xf32> to vector<120xf32>
    %2 = vector.shape_cast %1 : vector<120xf32> to vector<120x1xf32>
    %cst_1 = arith.constant 0.00127551018 : f32
    %3 = vector.broadcast %cst_1 : f32 to vector<120x1xf32>
    %4 = arith.mulf %2, %3 : vector<120x1xf32>
    %5 = vector.broadcast %4 : vector<120x1xf32> to vector<120x784xf32>
    %6 = arith.subf %0, %5 : vector<120x784xf32>
    %7 = arith.mulf %6, %6 : vector<120x784xf32>
    %cst_2 = arith.constant dense<0.000000e+00> : vector<120xf32>
    %8 = vector.multi_reduction <add>, %7, %cst_2 [1] : vector<120x784xf32> to vector<120xf32>
    %9 = vector.shape_cast %8 : vector<120xf32> to vector<120x1xf32>
    %cst_3 = arith.constant 0.00127551018 : f32
    %10 = vector.broadcast %cst_3 : f32 to vector<120x1xf32>
    %11 = arith.mulf %9, %10 : vector<120x1xf32>
    %c0_4 = arith.constant 0 : index
    %c0_5 = arith.constant 0 : index
    %12 = vector.load %arg3[%c0_4, %c0_5] : memref<120x1xf32, #tpu.memory_space<vmem>>, vector<120x1xf32>
    %cst_6 = arith.constant 9.99999974E-6 : f32
    %13 = vector.broadcast %cst_6 : f32 to vector<120x1xf32>
    %14 = arith.addf %11, %13 : vector<120x1xf32>
    %15 = math.rsqrt %14 : vector<120x1xf32>
    %16 = arith.mulf %12, %15 : vector<120x1xf32>
    %c0_7 = arith.constant 0 : index
    %c0_8 = arith.constant 0 : index
    %17 = vector.load %arg2[%c0_7, %c0_8] : memref<120x784xf32, #tpu.memory_space<vmem>>, vector<120x784xf32>
    %18 = vector.broadcast %16 : vector<120x1xf32> to vector<120x784xf32>
    %19 = arith.mulf %6, %18 : vector<120x784xf32>
    %20 = arith.addf %17, %19 : vector<120x784xf32>
    %c0_9 = arith.constant 0 : index
    %c0_10 = arith.constant 0 : index
    %21 = vector.load %arg4[%c0_9, %c0_10] : memref<120x1xf32, #tpu.memory_space<vmem>>, vector<120x1xf32>
    %22 = vector.broadcast %21 : vector<120x1xf32> to vector<120x784xf32>
    %23 = arith.addf %20, %22 : vector<120x784xf32>
    %cst_11 = arith.constant 0.000000e+00 : f32
    %24 = vector.broadcast %cst_11 : f32 to vector<120x784xf32>
    %25 = arith.maximumf %23, %24 : vector<120x784xf32>
    %c0_12 = arith.constant 0 : index
    %c0_13 = arith.constant 0 : index
    %26 = vector.load %arg5[%c0_12, %c0_13] : memref<120x784xf32, #tpu.memory_space<vmem>>, vector<120x784xf32>
    tpu.vector_store %arg5[%c0_12, %c0_13], %25 {strides = array<i32>} : memref<120x784xf32, #tpu.memory_space<vmem>>, vector<120x784xf32>,
    return
  }
  func.func @transform_0(%arg0: i32) -> (i32, i32) {
    %c0_i32 = arith.constant 0 : i32
    %c0_i32_0 = arith.constant 0 : i32
    return %arg0, %c0_i32 : i32, i32
  }
  func.func @transform_1(%arg0: i32) -> (i32, i32) {
    %c0_i32 = arith.constant 0 : i32
    %c0_i32_0 = arith.constant 0 : i32
    return %arg0, %c0_i32 : i32, i32
  }
  func.func @transform_2(%arg0: i32) -> (i32, i32) {
    %c0_i32 = arith.constant 0 : i32
    %c0_i32_0 = arith.constant 0 : i32
    return %arg0, %c0_i32 : i32, i32
  }
  func.func @transform_3(%arg0: i32) -> (i32, i32) {
    %c0_i32 = arith.constant 0 : i32
    %c0_i32_0 = arith.constant 0 : i32
    return %arg0, %c0_i32 : i32, i32
  }
  func.func @transform_4(%arg0: i32) -> (i32, i32) {
    %c0_i32 = arith.constant 0 : i32
    %c0_i32_0 = arith.constant 0 : i32
    return %arg0, %c0_i32 : i32, i32
  }
}

</mosaic_0001>

<llo_original>
// kernel: _pallas_bn_add_relu.1
$region0: #{_pallas_bn_add_relu.1}
  #allocation0 [shape = 'u32[]', space=smem, size = 0x4, offset = 0x4, fixed_abs, tag = 'smem constant byte address 0x4 - core index']
  #allocation1 [shape = 'u32[144,128]{1,0:T(1,128)}', space=vmem, size = 0x12000, scoped, tag = 'internal scratch']
  %s0 = inlined_call_operand.vmem [shape: f32[120,784], index: 0, kind: input, shape index: {}]
  %s1 = inlined_call_operand.vmem [shape: f32[120,784], index: 1, kind: input, shape index: {}, may-alias: {1,4}]
  %s2 = inlined_call_operand.vmem [shape: f32[120,1], index: 2, kind: input, shape index: {}]
  %s3 = inlined_call_operand.vmem [shape: f32[120,1], index: 3, kind: input, shape index: {}]
  %s4 = inlined_call_operand.vmem [shape: f32[120,784], index: 4, kind: output, shape index: {}, may-alias: {1,4}]
  %s5 = sld [smem:[#allocation0]]
  $region26: #{_pallas_bn_add_relu.1} parent=0
    _
  %s7 = ssub.s32 1, %s5
  %s8 = scalar_select 0, %s7, %s5
  // Predicated region
  $region2: #{_pallas_bn_add_relu.1} parent=0 // pred_check
    _
  $region3: #{_pallas_bn_add_relu.1} parent=0 // pred_check_branch
    %10 = sbr.rel (0) target = $region5
  $region4: #{_pallas_bn_add_relu.1} parent=0 // pred_region
    _
  $region5: #{_pallas_bn_add_relu.1} parent=0 // pred_fallthru
    _
  // Predicated region
  $region6: #{_pallas_bn_add_relu.1} parent=0 // pred_check
    _
  $region7: #{_pallas_bn_add_relu.1} parent=0 // pred_check_branch
    %12 = sbr.rel (0) target = $region9
  $region8: #{_pallas_bn_add_relu.1} parent=0 // pred_region
    _
  $region9: #{_pallas_bn_add_relu.1} parent=0 // pred_fallthru
    _
  // Predicated region
  $region10: #{_pallas_bn_add_relu.1} parent=0 // pred_check
    _
  $region11: #{_pallas_bn_add_relu.1} parent=0 // pred_check_branch
    %14 = sbr.rel (0) target = $region13
  $region12: #{_pallas_bn_add_relu.1} parent=0 // pred_region
    _
  $region13: #{_pallas_bn_add_relu.1} parent=0 // pred_fallthru
    _
  // Predicated region
  $region14: #{_pallas_bn_add_relu.1} parent=0 // pred_check
    _
  $region15: #{_pallas_bn_add_relu.1} parent=0 // pred_check_branch
    %16 = sbr.rel (0) target = $region17
  $region16: #{_pallas_bn_add_relu.1} parent=0 // pred_region
    _
  $region17: #{_pallas_bn_add_relu.1} parent=0 // pred_fallthru
    _
  %v17 = vld [vmem:[%s0] sm:$0xff]
  %v18 = vld [vmem:[%s0 + $0x8] sm:$0xff]
  %v19 = vld [vmem:[%s0 + $0x10] sm:$0xff]
  %v20 = vld [vmem:[%s0 + $0x18] sm:$0xff]
  %v21 = vld [vmem:[%s0 + $0x20] sm:$0xff]
  %v22 = vld [vmem:[%s0 + $0x28] sm:$0xff]
  %v23 = vld [vmem:[%s0 + $0x30] sm:$0xff]
  %v24 = vld [vmem:[%s0 + $0x38] sm:$0xff]
  %v25 = vld [vmem:[%s0 + $0x40] sm:$0xff]
  %v26 = vld [vmem:[%s0 + $0x48] sm:$0xff]
  %v27 = vld [vmem:[%s0 + $0x50] sm:$0xff]
  %v28 = vld [vmem:[%s0 + $0x58] sm:$0xff]
  %v29 = vld [vmem:[%s0 + $0x60] sm:$0xff]
  %v30 = vld [vmem:[%s0 + $0x68] sm:$0xff]
  %v31 = vld [vmem:[%s0 + $0x70] sm:$0xff]
  %v32 = vld [vmem:[%s0 + $0x78] sm:$0xff]
  %v33 = vld [vmem:[%s0 + $0x80] sm:$0xff]
  %v34 = vld [vmem:[%s0 + $0x88] sm:$0xff]
  %v35 = vld [vmem:[%s0 + $0x90] sm:$0xff]
  %v36 = vld [vmem:[%s0 + $0x98] sm:$0xff]
  %v37 = vld [vmem:[%s0 + $0xa0] sm:$0xff]
  %v38 = vld [vmem:[%s0 + $0xa8] sm:$0xff]
  %v39 = vld [vmem:[%s0 + $0xb0] sm:$0xff]
  %v40 = vld [vmem:[%s0 + $0xb8] sm:$0xff]
  %v41 = vld [vmem:[%s0 + $0xc0] sm:$0xff]
  %v42 = vld [vmem:[%s0 + $0xc8] sm:$0xff]
  %v43 = vld [vmem:[%s0 + $0xd0] sm:$0xff]
  %v44 = vld [vmem:[%s0 + $0xd8] sm:$0xff]
  %v45 = vld [vmem:[%s0 + $0xe0] sm:$0xff]
  %v46 = vld [vmem:[%s0 + $0xe8] sm:$0xff]
  %v47 = vld [vmem:[%s0 + $0xf0] sm:$0xff]
  %v48 = vld [vmem:[%s0 + $0xf8] sm:$0xff]
  %v49 = vld [vmem:[%s0 + $0x100] sm:$0xff]
  %v50 = vld [vmem:[%s0 + $0x108] sm:$0xff]
  %v51 = vld [vmem:[%s0 + $0x110] sm:$0xff]
  %v52 = vld [vmem:[%s0 + $0x118] sm:$0xff]
  %v53 = vld [vmem:[%s0 + $0x120] sm:$0xff]
  %v54 = vld [vmem:[%s0 + $0x128] sm:$0xff]
  %v55 = vld [vmem:[%s0 + $0x130] sm:$0xff]
  %v56 = vld [vmem:[%s0 + $0x138] sm:$0xff]
  %v57 = vld [vmem:[%s0 + $0x140] sm:$0xff]
  %v58 = vld [vmem:[%s0 + $0x148] sm:$0xff]
  %v59 = vld [vmem:[%s0 + $0x150] sm:$0xff]
  %v60 = vld [vmem:[%s0 + $0x158] sm:$0xff]
  %v61 = vld [vmem:[%s0 + $0x160] sm:$0xff]
  %v62 = vld [vmem:[%s0 + $0x168] sm:$0xff]
  %v63 = vld [vmem:[%s0 + $0x170] sm:$0xff]
  %v64 = vld [vmem:[%s0 + $0x178] sm:$0xff]
  %v65 = vld [vmem:[%s0 + $0x180] sm:$0xff]
  %v66 = vld [vmem:[%s0 + $0x188] sm:$0xff]
  %v67 = vld [vmem:[%s0 + $0x190] sm:$0xff]
  %v68 = vld [vmem:[%s0 + $0x198] sm:$0xff]
  %v69 = vld [vmem:[%s0 + $0x1a0] sm:$0xff]
  %v70 = vld [vmem:[%s0 + $0x1a8] sm:$0xff]
  %v71 = vld [vmem:[%s0 + $0x1b0] sm:$0xff]
  %v72 = vld [vmem:[%s0 + $0x1b8] sm:$0xff]
  %v73 = vld [vmem:[%s0 + $0x1c0] sm:$0xff]
  %v74 = vld [vmem:[%s0 + $0x1c8] sm:$0xff]
  %v75 = vld [vmem:[%s0 + $0x1d0] sm:$0xff]
  %v76 = vld [vmem:[%s0 + $0x1d8] sm:$0xff]
  %v77 = vld [vmem:[%s0 + $0x1e0] sm:$0xff]
  %v78 = vld [vmem:[%s0 + $0x1e8] sm:$0xff]
  %v79 = vld [vmem:[%s0 + $0x1f0] sm:$0xff]
  %v80 = vld [vmem:[%s0 + $0x1f8] sm:$0xff]
  %v81 = vld [vmem:[%s0 + $0x200] sm:$0xff]
  %v82 = vld [vmem:[%s0 + $0x208] sm:$0xff]
  %v83 = vld [vmem:[%s0 + $0x210] sm:$0xff]
  %v84 = vld [vmem:[%s0 + $0x218] sm:$0xff]
  %v85 = vld [vmem:[%s0 + $0x220] sm:$0xff]
  %v86 = vld [vmem:[%s0 + $0x228] sm:$0xff]
  %v87 = vld [vmem:[%s0 + $0x230] sm:$0xff]
  %v88 = vld [vmem:[%s0 + $0x238] sm:$0xff]
  %v89 = vld [vmem:[%s0 + $0x240] sm:$0xff]
  %v90 = vld [vmem:[%s0 + $0x248] sm:$0xff]
  %v91 = vld [vmem:[%s0 + $0x250] sm:$0xff]
  %v92 = vld [vmem:[%s0 + $0x258] sm:$0xff]
  %v93 = vld [vmem:[%s0 + $0x260] sm:$0xff]
  %v94 = vld [vmem:[%s0 + $0x268] sm:$0xff]
  %v95 = vld [vmem:[%s0 + $0x270] sm:$0xff]
  %v96 = vld [vmem:[%s0 + $0x278] sm:$0xff]
  %v97 = vld [vmem:[%s0 + $0x280] sm:$0xff]
  %v98 = vld [vmem:[%s0 + $0x288] sm:$0xff]
  %v99 = vld [vmem:[%s0 + $0x290] sm:$0xff]
  %v100 = vld [vmem:[%s0 + $0x298] sm:$0xff]
  %v101 = vld [vmem:[%s0 + $0x2a0] sm:$0xff]
  %v102 = vld [vmem:[%s0 + $0x2a8] sm:$0xff]
  %v103 = vld [vmem:[%s0 + $0x2b0] sm:$0xff]
  %v104 = vld [vmem:[%s0 + $0x2b8] sm:$0xff]
  %v105 = vld [vmem:[%s0 + $0x2c0] sm:$0xff]
  %v106 = vld [vmem:[%s0 + $0x2c8] sm:$0xff]
  %v107 = vld [vmem:[%s0 + $0x2d0] sm:$0xff]
  %v108 = vld [vmem:[%s0 + $0x2d8] sm:$0xff]
  %v109 = vld [vmem:[%s0 + $0x2e0] sm:$0xff]
  %v110 = vld [vmem:[%s0 + $0x2e8] sm:$0xff]
  %v111 = vld [vmem:[%s0 + $0x2f0] sm:$0xff]
  %v112 = vld [vmem:[%s0 + $0x2f8] sm:$0xff]
  %v113 = vld [vmem:[%s0 + $0x300] sm:$0xff]
  %v114 = vld [vmem:[%s0 + $0x308] sm:$0xff]
  %v115 = vld [vmem:[%s0 + $0x310] sm:$0xff]
  %v116 = vld [vmem:[%s0 + $0x318] sm:$0xff]
  %v117 = vld [vmem:[%s0 + $0x320] sm:$0xff]
  %v118 = vld [vmem:[%s0 + $0x328] sm:$0xff]
  %v119 = vld [vmem:[%s0 + $0x330] sm:$0xff]
  %v120 = vld [vmem:[%s0 + $0x338] sm:$0xff]
  %v121 = vld [vmem:[%s0 + $0x340] sm:$0xff]
  %v122 = vadd.f32 %v17, %v18
  %v123 = vadd.f32 %v122, %v19
  %v124 = vadd.f32 %v123, %v20
  %v125 = vadd.f32 %v124, %v21
  %v126 = vadd.f32 %v125, %v22
  %vm127 = vcmask 130048
  %v128 = vsel %vm127, %v23, 0.0
  %v129 = vadd.f32 %v126, %v128
  %130 = vadd.xlane.f32.xlu0 %v129
  %v131 = vpop.xlane.xlu0 %130
  %v132 = vadd.f32 %v24, %v25
  %v133 = vadd.f32 %v132, %v26
  %v134 = vadd.f32 %v133, %v27
  %v135 = vadd.f32 %v134, %v28
  %v136 = vadd.f32 %v135, %v29
  %v137 = vsel %vm127, %v30, 0.0
  %v138 = vadd.f32 %v136, %v137
  %139 = vadd.xlane.f32.xlu0 %v138
  %v140 = vpop.xlane.xlu0 %139
  %v141 = vadd.f32 %v31, %v32
  %v142 = vadd.f32 %v141, %v33
  %v143 = vadd.f32 %v142, %v34
  %v144 = vadd.f32 %v143, %v35
  %v145 = vadd.f32 %v144, %v36
  %v146 = vsel %vm127, %v37, 0.0
  %v147 = vadd.f32 %v145, %v146
  %148 = vadd.xlane.f32.xlu0 %v147
  %v149 = vpop.xlane.xlu0 %148
  %v150 = vadd.f32 %v38, %v39
  %v151 = vadd.f32 %v150, %v40
  %v152 = vadd.f32 %v151, %v41
  %v153 = vadd.f32 %v152, %v42
  %v154 = vadd.f32 %v153, %v43
  %v155 = vsel %vm127, %v44, 0.0
  %v156 = vadd.f32 %v154, %v155
  %157 = vadd.xlane.f32.xlu0 %v156
  %v158 = vpop.xlane.xlu0 %157
  %v159 = vadd.f32 %v45, %v46
  %v160 = vadd.f32 %v159, %v47
  %v161 = vadd.f32 %v160, %v48
  %v162 = vadd.f32 %v161, %v49
  %v163 = vadd.f32 %v162, %v50
  %v164 = vsel %vm127, %v51, 0.0
  %v165 = vadd.f32 %v163, %v164
  %166 = vadd.xlane.f32.xlu0 %v165
  %v167 = vpop.xlane.xlu0 %166
  %v168 = vadd.f32 %v52, %v53
  %v169 = vadd.f32 %v168, %v54
  %v170 = vadd.f32 %v169, %v55
  %v171 = vadd.f32 %v170, %v56
  %v172 = vadd.f32 %v171, %v57
  %v173 = vsel %vm127, %v58, 0.0
  %v174 = vadd.f32 %v172, %v173
  %175 = vadd.xlane.f32.xlu0 %v174
  %v176 = vpop.xlane.xlu0 %175
  %v177 = vadd.f32 %v59, %v60
  %v178 = vadd.f32 %v177, %v61
  %v179 = vadd.f32 %v178, %v62
  %v180 = vadd.f32 %v179, %v63
  %v181 = vadd.f32 %v180, %v64
  %v182 = vsel %vm127, %v65, 0.0
  %v183 = vadd.f32 %v181, %v182
  %184 = vadd.xlane.f32.xlu0 %v183
  %v185 = vpop.xlane.xlu0 %184
  %v186 = vadd.f32 %v66, %v67
  %v187 = vadd.f32 %v186, %v68
  %v188 = vadd.f32 %v187, %v69
  %v189 = vadd.f32 %v188, %v70
  %v190 = vadd.f32 %v189, %v71
  %v191 = vsel %vm127, %v72, 0.0
  %v192 = vadd.f32 %v190, %v191
  %193 = vadd.xlane.f32.xlu0 %v192
  %v194 = vpop.xlane.xlu0 %193
  %v195 = vadd.f32 %v73, %v74
  %v196 = vadd.f32 %v195, %v75
  %v197 = vadd.f32 %v196, %v76
  %v198 = vadd.f32 %v197, %v77
  %v199 = vadd.f32 %v198, %v78
  %v200 = vsel %vm127, %v79, 0.0
  %v201 = vadd.f32 %v199, %v200
  %202 = vadd.xlane.f32.xlu0 %v201
  %v203 = vpop.xlane.xlu0 %202
  %v204 = vadd.f32 %v80, %v81
  %v205 = vadd.f32 %v204, %v82
  %v206 = vadd.f32 %v205, %v83
  %v207 = vadd.f32 %v206, %v84
  %v208 = vadd.f32 %v207, %v85
  %v209 = vsel %vm127, %v86, 0.0
  %v210 = vadd.f32 %v208, %v209
  %211 = vadd.xlane.f32.xlu0 %v210
  %v212 = vpop.xlane.xlu0 %211
  %v213 = vadd.f32 %v87, %v88
  %v214 = vadd.f32 %v213, %v89
  %v215 = vadd.f32 %v214, %v90
  %v216 = vadd.f32 %v215, %v91
  %v217 = vadd.f32 %v216, %v92
  %v218 = vsel %vm127, %v93, 0.0
  %v219 = vadd.f32 %v217, %v218
  %220 = vadd.xlane.f32.xlu0 %v219
  %v221 = vpop.xlane.xlu0 %220
  %v222 = vadd.f32 %v94, %v95
  %v223 = vadd.f32 %v222, %v96
  %v224 = vadd.f32 %v223, %v97
  %v225 = vadd.f32 %v224, %v98
  %v226 = vadd.f32 %v225, %v99
  %v227 = vsel %vm127, %v100, 0.0
  %v228 = vadd.f32 %v226, %v227
  %229 = vadd.xlane.f32.xlu0 %v228
  %v230 = vpop.xlane.xlu0 %229
  %v231 = vadd.f32 %v101, %v102
  %v232 = vadd.f32 %v231, %v103
  %v233 = vadd.f32 %v232, %v104
  %v234 = vadd.f32 %v233, %v105
  %v235 = vadd.f32 %v234, %v106
  %v236 = vsel %vm127, %v107, 0.0
  %v237 = vadd.f32 %v235, %v236
  %238 = vadd.xlane.f32.xlu0 %v237
  %v239 = vpop.xlane.xlu0 %238
  %v240 = vadd.f32 %v108, %v109
  %v241 = vadd.f32 %v240, %v110
  %v242 = vadd.f32 %v241, %v111
  %v243 = vadd.f32 %v242, %v112
  %v244 = vadd.f32 %v243, %v113
  %v245 = vsel %vm127, %v114, 0.0
  %v246 = vadd.f32 %v244, %v245
  %247 = vadd.xlane.f32.xlu0 %v246
  %v248 = vpop.xlane.xlu0 %247
  %v249 = vadd.f32 %v115, %v116
  %v250 = vadd.f32 %v249, %v117
  %v251 = vadd.f32 %v250, %v118
  %v252 = vadd.f32 %v251, %v119
  %v253 = vadd.f32 %v252, %v120
  %v254 = vsel %vm127, %v121, 0.0
  %v255 = vadd.f32 %v253, %v254
  %256 = vadd.xlane.f32.xlu0 %v255
  %v257 = vpop.xlane.xlu0 %256
  %v258 = vmul.f32 %v131, 0.0012755102
  %v259 = vmul.f32 %v140, 0.0012755102
  %v260 = vmul.f32 %v149, 0.0012755102
  %v261 = vmul.f32 %v158, 0.0012755102
  %v262 = vmul.f32 %v167, 0.0012755102
  %v263 = vmul.f32 %v176, 0.0012755102
  %v264 = vmul.f32 %v185, 0.0012755102
  %v265 = vmul.f32 %v194, 0.0012755102
  %v266 = vmul.f32 %v203, 0.0012755102
  %v267 = vmul.f32 %v212, 0.0012755102
  %v268 = vmul.f32 %v221, 0.0012755102
  %v269 = vmul.f32 %v230, 0.0012755102
  %v270 = vmul.f32 %v239, 0.0012755102
  %v271 = vmul.f32 %v248, 0.0012755102
  %v272 = vmul.f32 %v257, 0.0012755102
  %v273 = vsub.f32 %v17, %v258
  %v274 = vsub.f32 %v18, %v258
  %v275 = vsub.f32 %v19, %v258
  %v276 = vsub.f32 %v20, %v258
  %v277 = vsub.f32 %v21, %v258
  %v278 = vsub.f32 %v22, %v258
  %v279 = vsub.f32 %v23, %v258
  %v280 = vsub.f32 %v24, %v259
  %v281 = vsub.f32 %v25, %v259
  %v282 = vsub.f32 %v26, %v259
  %v283 = vsub.f32 %v27, %v259
  %v284 = vsub.f32 %v28, %v259
  %v285 = vsub.f32 %v29, %v259
  %v286 = vsub.f32 %v30, %v259
  %v287 = vsub.f32 %v31, %v260
  %v288 = vsub.f32 %v32, %v260
  %v289 = vsub.f32 %v33, %v260
  %v290 = vsub.f32 %v34, %v260
  %v291 = vsub.f32 %v35, %v260
  %v292 = vsub.f32 %v36, %v260
  %v293 = vsub.f32 %v37, %v260
  %v294 = vsub.f32 %v38, %v261
  %v295 = vsub.f32 %v39, %v261
  %v296 = vsub.f32 %v40, %v261
  %v297 = vsub.f32 %v41, %v261
  %v298 = vsub.f32 %v42, %v261
  %v299 = vsub.f32 %v43, %v261
  %v300 = vsub.f32 %v44, %v261
  %v301 = vsub.f32 %v45, %v262
  %v302 = vsub.f32 %v46, %v262
  %v303 = vsub.f32 %v47, %v262
  %v304 = vsub.f32 %v48, %v262
  %v305 = vsub.f32 %v49, %v262
  %v306 = vsub.f32 %v50, %v262
  %v307 = vsub.f32 %v51, %v262
  %v308 = vsub.f32 %v52, %v263
  %v309 = vsub.f32 %v53, %v263
  %v310 = vsub.f32 %v54, %v263
  %v311 = vsub.f32 %v55, %v263
  %v312 = vsub.f32 %v56, %v263
  %v313 = vsub.f32 %v57, %v263
  %v314 = vsub.f32 %v58, %v263
  %v315 = vsub.f32 %v59, %v264
  %v316 = vsub.f32 %v60, %v264
  %v317 = vsub.f32 %v61, %v264
  %v318 = vsub.f32 %v62, %v264
  %v319 = vsub.f32 %v63, %v264
  %v320 = vsub.f32 %v64, %v264
  %v321 = vsub.f32 %v65, %v264
  %v322 = vsub.f32 %v66, %v265
  %v323 = vsub.f32 %v67, %v265
  %v324 = vsub.f32 %v68, %v265
  %v325 = vsub.f32 %v69, %v265
  %v326 = vsub.f32 %v70, %v265
  %v327 = vsub.f32 %v71, %v265
  %v328 = vsub.f32 %v72, %v265
  %v329 = vsub.f32 %v73, %v266
  %v330 = vsub.f32 %v74, %v266
  %v331 = vsub.f32 %v75, %v266
  %v332 = vsub.f32 %v76, %v266
  %v333 = vsub.f32 %v77, %v266
  %v334 = vsub.f32 %v78, %v266
  %v335 = vsub.f32 %v79, %v266
  %v336 = vsub.f32 %v80, %v267
  %v337 = vsub.f32 %v81, %v267
  %v338 = vsub.f32 %v82, %v267
  %v339 = vsub.f32 %v83, %v267
  %v340 = vsub.f32 %v84, %v267
  %v341 = vsub.f32 %v85, %v267
  %v342 = vsub.f32 %v86, %v267
  %v343 = vsub.f32 %v87, %v268
  %v344 = vsub.f32 %v88, %v268
  %v345 = vsub.f32 %v89, %v268
  %v346 = vsub.f32 %v90, %v268
  %v347 = vsub.f32 %v91, %v268
  %v348 = vsub.f32 %v92, %v268
  %v349 = vsub.f32 %v93, %v268
  %v350 = vsub.f32 %v94, %v269
  %v351 = vsub.f32 %v95, %v269
  %v352 = vsub.f32 %v96, %v269
  %v353 = vsub.f32 %v97, %v269
  %v354 = vsub.f32 %v98, %v269
  %v355 = vsub.f32 %v99, %v269
  %v356 = vsub.f32 %v100, %v269
  %v357 = vsub.f32 %v101, %v270
  %v358 = vsub.f32 %v102, %v270
  %v359 = vsub.f32 %v103, %v270
  %v360 = vsub.f32 %v104, %v270
  %v361 = vsub.f32 %v105, %v270
  %v362 = vsub.f32 %v106, %v270
  %v363 = vsub.f32 %v107, %v270
  %v364 = vsub.f32 %v108, %v271
  %v365 = vsub.f32 %v109, %v271
  %v366 = vsub.f32 %v110, %v271
  %v367 = vsub.f32 %v111, %v271
  %v368 = vsub.f32 %v112, %v271
  %v369 = vsub.f32 %v113, %v271
  %v370 = vsub.f32 %v114, %v271
  %v371 = vsub.f32 %v115, %v272
  %v372 = vsub.f32 %v116, %v272
  %v373 = vsub.f32 %v117, %v272
  %v374 = vsub.f32 %v118, %v272
  %v375 = vsub.f32 %v119, %v272
  %v376 = vsub.f32 %v120, %v272
  %v377 = vsub.f32 %v121, %v272
  %v378 = vmul.f32 %v273, %v273
  %v379 = vmul.f32 %v274, %v274
  %v380 = vmul.f32 %v275, %v275
  %v381 = vmul.f32 %v276, %v276
  %v382 = vmul.f32 %v277, %v277
  %v383 = vmul.f32 %v278, %v278
  %v384 = vmul.f32 %v279, %v279
  %v385 = vmul.f32 %v280, %v280
  %v386 = vmul.f32 %v281, %v281
  %v387 = vmul.f32 %v282, %v282
  %v388 = vmul.f32 %v283, %v283
  %v389 = vmul.f32 %v284, %v284
  %v390 = vmul.f32 %v285, %v285
  %v391 = vmul.f32 %v286, %v286
  %v392 = vmul.f32 %v287, %v287
  %v393 = vmul.f32 %v288, %v288
  %v394 = vmul.f32 %v289, %v289
  %v395 = vmul.f32 %v290, %v290
  %v396 = vmul.f32 %v291, %v291
  %v397 = vmul.f32 %v292, %v292
  %v398 = vmul.f32 %v293, %v293
  %v399 = vmul.f32 %v294, %v294
  %v400 = vmul.f32 %v295, %v295
  %v401 = vmul.f32 %v296, %v296
  %v402 = vmul.f32 %v297, %v297
  %v403 = vmul.f32 %v298, %v298
  %v404 = vmul.f32 %v299, %v299
  %v405 = vmul.f32 %v300, %v300
  %v406 = vmul.f32 %v301, %v301
  %v407 = vmul.f32 %v302, %v302
  %v408 = vmul.f32 %v303, %v303
  %v409 = vmul.f32 %v304, %v304
  %v410 = vmul.f32 %v305, %v305
  %v411 = vmul.f32 %v306, %v306
  %v412 = vmul.f32 %v307, %v307
  %v413 = vmul.f32 %v308, %v308
  %v414 = vmul.f32 %v309, %v309
  %v415 = vmul.f32 %v310, %v310
  %v416 = vmul.f32 %v311, %v311
  %v417 = vmul.f32 %v312, %v312
  %v418 = vmul.f32 %v313, %v313
  %v419 = vmul.f32 %v314, %v314
  %v420 = vmul.f32 %v315, %v315
  %v421 = vmul.f32 %v316, %v316
  %v422 = vmul.f32 %v317, %v317
  %v423 = vmul.f32 %v318, %v318
  %v424 = vmul.f32 %v319, %v319
  %v425 = vmul.f32 %v320, %v320
  %v426 = vmul.f32 %v321, %v321
  %v427 = vmul.f32 %v322, %v322
  %v428 = vmul.f32 %v323, %v323
  %v429 = vmul.f32 %v324, %v324
  %v430 = vmul.f32 %v325, %v325
  %v431 = vmul.f32 %v326, %v326
  %v432 = vmul.f32 %v327, %v327
  %v433 = vmul.f32 %v328, %v328
  %v434 = vmul.f32 %v329, %v329
  %v435 = vmul.f32 %v330, %v330
  %v436 = vmul.f32 %v331, %v331
  %v437 = vmul.f32 %v332, %v332
  %v438 = vmul.f32 %v333, %v333
  %v439 = vmul.f32 %v334, %v334
  %v440 = vmul.f32 %v335, %v335
  %v441 = vmul.f32 %v336, %v336
  %v442 = vmul.f32 %v337, %v337
  %v443 = vmul.f32 %v338, %v338
  %v444 = vmul.f32 %v339, %v339
  %v445 = vmul.f32 %v340, %v340
  %v446 = vmul.f32 %v341, %v341
  %v447 = vmul.f32 %v342, %v342
  %v448 = vmul.f32 %v343, %v343
  %v449 = vmul.f32 %v344, %v344
  %v450 = vmul.f32 %v345, %v345
  %v451 = vmul.f32 %v346, %v346
  %v452 = vmul.f32 %v347, %v347
  %v453 = vmul.f32 %v348, %v348
  %v454 = vmul.f32 %v349, %v349
  %v455 = vmul.f32 %v350, %v350
  %v456 = vmul.f32 %v351, %v351
  %v457 = vmul.f32 %v352, %v352
  %v458 = vmul.f32 %v353, %v353
  %v459 = vmul.f32 %v354, %v354
  %v460 = vmul.f32 %v355, %v355
  %v461 = vmul.f32 %v356, %v356
  %v462 = vmul.f32 %v357, %v357
  %v463 = vmul.f32 %v358, %v358
  %v464 = vmul.f32 %v359, %v359
  %v465 = vmul.f32 %v360, %v360
  %v466 = vmul.f32 %v361, %v361
  %v467 = vmul.f32 %v362, %v362
  %v468 = vmul.f32 %v363, %v363
  %v469 = vmul.f32 %v364, %v364
  %v470 = vmul.f32 %v365, %v365
  %v471 = vmul.f32 %v366, %v366
  %v472 = vmul.f32 %v367, %v367
  %v473 = vmul.f32 %v368, %v368
  %v474 = vmul.f32 %v369, %v369
  %v475 = vmul.f32 %v370, %v370
  %v476 = vmul.f32 %v371, %v371
  %v477 = vmul.f32 %v372, %v372
  %v478 = vmul.f32 %v373, %v373
  %v479 = vmul.f32 %v374, %v374
  %v480 = vmul.f32 %v375, %v375
  %v481 = vmul.f32 %v376, %v376
  %v482 = vmul.f32 %v377, %v377
  %v483 = vadd.f32 %v378, %v379
  %v484 = vadd.f32 %v483, %v380
  %v485 = vadd.f32 %v484, %v381
  %v486 = vadd.f32 %v485, %v382
  %v487 = vadd.f32 %v486, %v383
  %v488 = vsel %vm127, %v384, 0.0
  %v489 = vadd.f32 %v487, %v488
  %490 = vadd.xlane.f32.xlu0 %v489
  %v491 = vpop.xlane.xlu0 %490
  %v492 = vadd.f32 %v385, %v386
  %v493 = vadd.f32 %v492, %v387
  %v494 = vadd.f32 %v493, %v388
  %v495 = vadd.f32 %v494, %v389
  %v496 = vadd.f32 %v495, %v390
  %v497 = vsel %vm127, %v391, 0.0
  %v498 = vadd.f32 %v496, %v497
  %499 = vadd.xlane.f32.xlu0 %v498
  %v500 = vpop.xlane.xlu0 %499
  %v501 = vadd.f32 %v392, %v393
  %v502 = vadd.f32 %v501, %v394
  %v503 = vadd.f32 %v502, %v395
  %v504 = vadd.f32 %v503, %v396
  %v505 = vadd.f32 %v504, %v397
  %v506 = vsel %vm127, %v398, 0.0
  %v507 = vadd.f32 %v505, %v506
  %508 = vadd.xlane.f32.xlu0 %v507
  %v509 = vpop.xlane.xlu0 %508
  %v510 = vadd.f32 %v399, %v400
  %v511 = vadd.f32 %v510, %v401
  %v512 = vadd.f32 %v511, %v402
  %v513 = vadd.f32 %v512, %v403
  %v514 = vadd.f32 %v513, %v404
  %v515 = vsel %vm127, %v405, 0.0
  %v516 = vadd.f32 %v514, %v515
  %517 = vadd.xlane.f32.xlu0 %v516
  %v518 = vpop.xlane.xlu0 %517
  %v519 = vadd.f32 %v406, %v407
  %v520 = vadd.f32 %v519, %v408
  %v521 = vadd.f32 %v520, %v409
  %v522 = vadd.f32 %v521, %v410
  %v523 = vadd.f32 %v522, %v411
  %v524 = vsel %vm127, %v412, 0.0
  %v525 = vadd.f32 %v523, %v524
  %526 = vadd.xlane.f32.xlu0 %v525
  %v527 = vpop.xlane.xlu0 %526
  %v528 = vadd.f32 %v413, %v414
  %v529 = vadd.f32 %v528, %v415
  %v530 = vadd.f32 %v529, %v416
  %v531 = vadd.f32 %v530, %v417
  %v532 = vadd.f32 %v531, %v418
  %v533 = vsel %vm127, %v419, 0.0
  %v534 = vadd.f32 %v532, %v533
  %535 = vadd.xlane.f32.xlu0 %v534
  %v536 = vpop.xlane.xlu0 %535
  %v537 = vadd.f32 %v420, %v421
  %v538 = vadd.f32 %v537, %v422
  %v539 = vadd.f32 %v538, %v423
  %v540 = vadd.f32 %v539, %v424
  %v541 = vadd.f32 %v540, %v425
  %v542 = vsel %vm127, %v426, 0.0
  %v543 = vadd.f32 %v541, %v542
  %544 = vadd.xlane.f32.xlu0 %v543
  %v545 = vpop.xlane.xlu0 %544
  %v546 = vadd.f32 %v427, %v428
  %v547 = vadd.f32 %v546, %v429
  %v548 = vadd.f32 %v547, %v430
  %v549 = vadd.f32 %v548, %v431
  %v550 = vadd.f32 %v549, %v432
  %v551 = vsel %vm127, %v433, 0.0
  %v552 = vadd.f32 %v550, %v551
  %553 = vadd.xlane.f32.xlu0 %v552
  %v554 = vpop.xlane.xlu0 %553
  %v555 = vadd.f32 %v434, %v435
  %v556 = vadd.f32 %v555, %v436
  %v557 = vadd.f32 %v556, %v437
  %v558 = vadd.f32 %v557, %v438
  %v559 = vadd.f32 %v558, %v439
  %v560 = vsel %vm127, %v440, 0.0
  %v561 = vadd.f32 %v559, %v560
  %562 = vadd.xlane.f32.xlu0 %v561
  %v563 = vpop.xlane.xlu0 %562
  %v564 = vadd.f32 %v441, %v442
  %v565 = vadd.f32 %v564, %v443
  %v566 = vadd.f32 %v565, %v444
  %v567 = vadd.f32 %v566, %v445
  %v568 = vadd.f32 %v567, %v446
  %v569 = vsel %vm127, %v447, 0.0
  %v570 = vadd.f32 %v568, %v569
  %571 = vadd.xlane.f32.xlu0 %v570
  %v572 = vpop.xlane.xlu0 %571
  %v573 = vadd.f32 %v448, %v449
  %v574 = vadd.f32 %v573, %v450
  %v575 = vadd.f32 %v574, %v451
  %v576 = vadd.f32 %v575, %v452
  %v577 = vadd.f32 %v576, %v453
  %v578 = vsel %vm127, %v454, 0.0
  %v579 = vadd.f32 %v577, %v578
  %580 = vadd.xlane.f32.xlu0 %v579
  %v581 = vpop.xlane.xlu0 %580
  %v582 = vadd.f32 %v455, %v456
  %v583 = vadd.f32 %v582, %v457
  %v584 = vadd.f32 %v583, %v458
  %v585 = vadd.f32 %v584, %v459
  %v586 = vadd.f32 %v585, %v460
  %v587 = vsel %vm127, %v461, 0.0
  %v588 = vadd.f32 %v586, %v587
  %589 = vadd.xlane.f32.xlu0 %v588
  %v590 = vpop.xlane.xlu0 %589
  %v591 = vadd.f32 %v462, %v463
  %v592 = vadd.f32 %v591, %v464
  %v593 = vadd.f32 %v592, %v465
  %v594 = vadd.f32 %v593, %v466
  %v595 = vadd.f32 %v594, %v467
  %v596 = vsel %vm127, %v468, 0.0
  %v597 = vadd.f32 %v595, %v596
  %598 = vadd.xlane.f32.xlu0 %v597
  %v599 = vpop.xlane.xlu0 %598
  %v600 = vadd.f32 %v469, %v470
  %v601 = vadd.f32 %v600, %v471
  %v602 = vadd.f32 %v601, %v472
  %v603 = vadd.f32 %v602, %v473
  %v604 = vadd.f32 %v603, %v474
  %v605 = vsel %vm127, %v475, 0.0
  %v606 = vadd.f32 %v604, %v605
  %607 = vadd.xlane.f32.xlu0 %v606
  %v608 = vpop.xlane.xlu0 %607
  %v609 = vadd.f32 %v476, %v477
  %v610 = vadd.f32 %v609, %v478
  %v611 = vadd.f32 %v610, %v479
  %v612 = vadd.f32 %v611, %v480
  %v613 = vadd.f32 %v612, %v481
  %v614 = vsel %vm127, %v482, 0.0
  %v615 = vadd.f32 %v613, %v614
  %616 = vadd.xlane.f32.xlu0 %v615
  %v617 = vpop.xlane.xlu0 %616
  %v618 = vmul.f32 %v491, 0.0012755102
  %v619 = vmul.f32 %v500, 0.0012755102
  %v620 = vmul.f32 %v509, 0.0012755102
  %v621 = vmul.f32 %v518, 0.0012755102
  %v622 = vmul.f32 %v527, 0.0012755102
  %v623 = vmul.f32 %v536, 0.0012755102
  %v624 = vmul.f32 %v545, 0.0012755102
  %v625 = vmul.f32 %v554, 0.0012755102
  %v626 = vmul.f32 %v563, 0.0012755102
  %v627 = vmul.f32 %v572, 0.0012755102
  %v628 = vmul.f32 %v581, 0.0012755102
  %v629 = vmul.f32 %v590, 0.0012755102
  %v630 = vmul.f32 %v599, 0.0012755102
  %v631 = vmul.f32 %v608, 0.0012755102
  %v632 = vmul.f32 %v617, 0.0012755102
  %v633 = vld [vmem:[%s2] sm:$0xff]
  %v634 = vld [vmem:[%s2 + $0x8] sm:$0xff]
  %v635 = vld [vmem:[%s2 + $0x10] sm:$0xff]
  %v636 = vld [vmem:[%s2 + $0x18] sm:$0xff]
  %v637 = vld [vmem:[%s2 + $0x20] sm:$0xff]
  %v638 = vld [vmem:[%s2 + $0x28] sm:$0xff]
  %v639 = vld [vmem:[%s2 + $0x30] sm:$0xff]
  %v640 = vld [vmem:[%s2 + $0x38] sm:$0xff]
  %v641 = vld [vmem:[%s2 + $0x40] sm:$0xff]
  %v642 = vld [vmem:[%s2 + $0x48] sm:$0xff]
  %v643 = vld [vmem:[%s2 + $0x50] sm:$0xff]
  %v644 = vld [vmem:[%s2 + $0x58] sm:$0xff]
  %v645 = vld [vmem:[%s2 + $0x60] sm:$0xff]
  %v646 = vld [vmem:[%s2 + $0x68] sm:$0xff]
  %v647 = vld [vmem:[%s2 + $0x70] sm:$0xff]
  %v648 = vadd.f32 %v618, 1e-05
  %v649 = vadd.f32 %v619, 1e-05
  %v650 = vadd.f32 %v620, 1e-05
  %v651 = vadd.f32 %v621, 1e-05
  %v652 = vadd.f32 %v622, 1e-05
  %v653 = vadd.f32 %v623, 1e-05
  %v654 = vadd.f32 %v624, 1e-05
  %v655 = vadd.f32 %v625, 1e-05
  %v656 = vadd.f32 %v626, 1e-05
  %v657 = vadd.f32 %v627, 1e-05
  %v658 = vadd.f32 %v628, 1e-05
  %v659 = vadd.f32 %v629, 1e-05
  %v660 = vadd.f32 %v630, 1e-05
  %v661 = vadd.f32 %v631, 1e-05
  %v662 = vadd.f32 %v632, 1e-05
  %v663 = vrsqrt.pop %v648
  %v664 = vrsqrt.pop %v649
  %v665 = vrsqrt.pop %v650
  %v666 = vrsqrt.pop %v651
  %v667 = vrsqrt.pop %v652
  %v668 = vrsqrt.pop %v653
  %v669 = vrsqrt.pop %v654
  %v670 = vrsqrt.pop %v655
  %v671 = vrsqrt.pop %v656
  %v672 = vrsqrt.pop %v657
  %v673 = vrsqrt.pop %v658
  %v674 = vrsqrt.pop %v659
  %v675 = vrsqrt.pop %v660
  %v676 = vrsqrt.pop %v661
  %v677 = vrsqrt.pop %v662
  %v678 = vmul.f32 %v633, %v663
  %v679 = vmul.f32 %v634, %v664
  %v680 = vmul.f32 %v635, %v665
  %v681 = vmul.f32 %v636, %v666
  %v682 = vmul.f32 %v637, %v667
  %v683 = vmul.f32 %v638, %v668
  %v684 = vmul.f32 %v639, %v669
  %v685 = vmul.f32 %v640, %v670
  %v686 = vmul.f32 %v641, %v671
  %v687 = vmul.f32 %v642, %v672
  %v688 = vmul.f32 %v643, %v673
  %v689 = vmul.f32 %v644, %v674
  %v690 = vmul.f32 %v645, %v675
  %v691 = vmul.f32 %v646, %v676
  %v692 = vmul.f32 %v647, %v677
  %v693 = vld [vmem:[%s1] sm:$0xff]
  %v694 = vld [vmem:[%s1 + $0x8] sm:$0xff]
  %v695 = vld [vmem:[%s1 + $0x10] sm:$0xff]
  %v696 = vld [vmem:[%s1 + $0x18] sm:$0xff]
  %v697 = vld [vmem:[%s1 + $0x20] sm:$0xff]
  %v698 = vld [vmem:[%s1 + $0x28] sm:$0xff]
  %v699 = vld [vmem:[%s1 + $0x30] sm:$0xff]
  %v700 = vld [vmem:[%s1 + $0x38] sm:$0xff]
  %v701 = vld [vmem:[%s1 + $0x40] sm:$0xff]
  %v702 = vld [vmem:[%s1 + $0x48] sm:$0xff]
  %v703 = vld [vmem:[%s1 + $0x50] sm:$0xff]
  %v704 = vld [vmem:[%s1 + $0x58] sm:$0xff]
  %v705 = vld [vmem:[%s1 + $0x60] sm:$0xff]
  %v706 = vld [vmem:[%s1 + $0x68] sm:$0xff]
  %v707 = vld [vmem:[%s1 + $0x70] sm:$0xff]
  %v708 = vld [vmem:[%s1 + $0x78] sm:$0xff]
  %v709 = vld [vmem:[%s1 + $0x80] sm:$0xff]
  %v710 = vld [vmem:[%s1 + $0x88] sm:$0xff]
  %v711 = vld [vmem:[%s1 + $0x90] sm:$0xff]
  %v712 = vld [vmem:[%s1 + $0x98] sm:$0xff]
  %v713 = vld [vmem:[%s1 + $0xa0] sm:$0xff]
  %v714 = vld [vmem:[%s1 + $0xa8] sm:$0xff]
  %v715 = vld [vmem:[%s1 + $0xb0] sm:$0xff]
  %v716 = vld [vmem:[%s1 + $0xb8] sm:$0xff]
  %v717 = vld [vmem:[%s1 + $0xc0] sm:$0xff]
  %v718 = vld [vmem:[%s1 + $0xc8] sm:$0xff]
  %v719 = vld [vmem:[%s1 + $0xd0] sm:$0xff]
  %v720 = vld [vmem:[%s1 + $0xd8] sm:$0xff]
  %v721 = vld [vmem:[%s1 + $0xe0] sm:$0xff]
  %v722 = vld [vmem:[%s1 + $0xe8] sm:$0xff]
  %v723 = vld [vmem:[%s1 + $0xf0] sm:$0xff]
  %v724 = vld [vmem:[%s1 + $0xf8] sm:$0xff]
  %v725 = vld [vmem:[%s1 + $0x100] sm:$0xff]
  %v726 = vld [vmem:[%s1 + $0x108] sm:$0xff]
  %v727 = vld [vmem:[%s1 + $0x110] sm:$0xff]
  %v728 = vld [vmem:[%s1 + $0x118] sm:$0xff]
  %v729 = vld [vmem:[%s1 + $0x120] sm:$0xff]
  %v730 = vld [vmem:[%s1 + $0x128] sm:$0xff]
  %v731 = vld [vmem:[%s1 + $0x130] sm:$0xff]
  %v732 = vld [vmem:[%s1 + $0x138] sm:$0xff]
  %v733 = vld [vmem:[%s1 + $0x140] sm:$0xff]
  %v734 = vld [vmem:[%s1 + $0x148] sm:$0xff]
  %v735 = vld [vmem:[%s1 + $0x150] sm:$0xff]
  %v736 = vld [vmem:[%s1 + $0x158] sm:$0xff]
  %v737 = vld [vmem:[%s1 + $0x160] sm:$0xff]
  %v738 = vld [vmem:[%s1 + $0x168] sm:$0xff]
  %v739 = vld [vmem:[%s1 + $0x170] sm:$0xff]
  %v740 = vld [vmem:[%s1 + $0x178] sm:$0xff]
  %v741 = vld [vmem:[%s1 + $0x180] sm:$0xff]
  %v742 = vld [vmem:[%s1 + $0x188] sm:$0xff]
  %v743 = vld [vmem:[%s1 + $0x190] sm:$0xff]
  %v744 = vld [vmem:[%s1 + $0x198] sm:$0xff]
  %v745 = vld [vmem:[%s1 + $0x1a0] sm:$0xff]
  %v746 = vld [vmem:[%s1 + $0x1a8] sm:$0xff]
  %v747 = vld [vmem:[%s1 + $0x1b0] sm:$0xff]
  %v748 = vld [vmem:[%s1 + $0x1b8] sm:$0xff]
  %v749 = vld [vmem:[%s1 + $0x1c0] sm:$0xff]
  %v750 = vld [vmem:[%s1 + $0x1c8] sm:$0xff]
  %v751 = vld [vmem:[%s1 + $0x1d0] sm:$0xff]
  %v752 = vld [vmem:[%s1 + $0x1d8] sm:$0xff]
  %v753 = vld [vmem:[%s1 + $0x1e0] sm:$0xff]
  %v754 = vld [vmem:[%s1 + $0x1e8] sm:$0xff]
  %v755 = vld [vmem:[%s1 + $0x1f0] sm:$0xff]
  %v756 = vld [vmem:[%s1 + $0x1f8] sm:$0xff]
  %v757 = vld [vmem:[%s1 + $0x200] sm:$0xff]
  %v758 = vld [vmem:[%s1 + $0x208] sm:$0xff]
  %v759 = vld [vmem:[%s1 + $0x210] sm:$0xff]
  %v760 = vld [vmem:[%s1 + $0x218] sm:$0xff]
  %v761 = vld [vmem:[%s1 + $0x220] sm:$0xff]
  %v762 = vld [vmem:[%s1 + $0x228] sm:$0xff]
  %v763 = vld [vmem:[%s1 + $0x230] sm:$0xff]
  %v764 = vld [vmem:[%s1 + $0x238] sm:$0xff]
  %v765 = vld [vmem:[%s1 + $0x240] sm:$0xff]
  %v766 = vld [vmem:[%s1 + $0x248] sm:$0xff]
  %v767 = vld [vmem:[%s1 + $0x250] sm:$0xff]
  %v768 = vld [vmem:[%s1 + $0x258] sm:$0xff]
  %v769 = vld [vmem:[%s1 + $0x260] sm:$0xff]
  %v770 = vld [vmem:[%s1 + $0x268] sm:$0xff]
  %v771 = vld [vmem:[%s1 + $0x270] sm:$0xff]
  %v772 = vld [vmem:[%s1 + $0x278] sm:$0xff]
  %v773 = vld [vmem:[%s1 + $0x280] sm:$0xff]
  %v774 = vld [vmem:[%s1 + $0x288] sm:$0xff]
  %v775 = vld [vmem:[%s1 + $0x290] sm:$0xff]
  %v776 = vld [vmem:[%s1 + $0x298] sm:$0xff]
  %v777 = vld [vmem:[%s1 + $0x2a0] sm:$0xff]
  %v778 = vld [vmem:[%s1 + $0x2a8] sm:$0xff]
  %v779 = vld [vmem:[%s1 + $0x2b0] sm:$0xff]
  %v780 = vld [vmem:[%s1 + $0x2b8] sm:$0xff]
  %v781 = vld [vmem:[%s1 + $0x2c0] sm:$0xff]
  %v782 = vld [vmem:[%s1 + $0x2c8] sm:$0xff]
  %v783 = vld [vmem:[%s1 + $0x2d0] sm:$0xff]
  %v784 = vld [vmem:[%s1 + $0x2d8] sm:$0xff]
  %v785 = vld [vmem:[%s1 + $0x2e0] sm:$0xff]
  %v786 = vld [vmem:[%s1 + $0x2e8] sm:$0xff]
  %v787 = vld [vmem:[%s1 + $0x2f0] sm:$0xff]
  %v788 = vld [vmem:[%s1 + $0x2f8] sm:$0xff]
  %v789 = vld [vmem:[%s1 + $0x300] sm:$0xff]
  %v790 = vld [vmem:[%s1 + $0x308] sm:$0xff]
  %v791 = vld [vmem:[%s1 + $0x310] sm:$0xff]
  %v792 = vld [vmem:[%s1 + $0x318] sm:$0xff]
  %v793 = vld [vmem:[%s1 + $0x320] sm:$0xff]
  %v794 = vld [vmem:[%s1 + $0x328] sm:$0xff]
  %v795 = vld [vmem:[%s1 + $0x330] sm:$0xff]
  %v796 = vld [vmem:[%s1 + $0x338] sm:$0xff]
  %v797 = vld [vmem:[%s1 + $0x340] sm:$0xff]
  %799 = vset.pattern.permute.xlu0 0
  %800 = vperm.xlu0 %799, %v678
  %v801 = vpop.permute.xlu0 %800
  %804 = vset.pattern.permute.xlu0 0
  %805 = vperm.xlu0 %804, %v679
  %v806 = vpop.permute.xlu0 %805
  %809 = vset.pattern.permute.xlu0 0
  %810 = vperm.xlu0 %809, %v680
  %v811 = vpop.permute.xlu0 %810
  %814 = vset.pattern.permute.xlu0 0
  %815 = vperm.xlu0 %814, %v681
  %v816 = vpop.permute.xlu0 %815
  %819 = vset.pattern.permute.xlu0 0
  %820 = vperm.xlu0 %819, %v682
  %v821 = vpop.permute.xlu0 %820
  %824 = vset.pattern.permute.xlu0 0
  %825 = vperm.xlu0 %824, %v683
  %v826 = vpop.permute.xlu0 %825
  %829 = vset.pattern.permute.xlu0 0
  %830 = vperm.xlu0 %829, %v684
  %v831 = vpop.permute.xlu0 %830
  %834 = vset.pattern.permute.xlu0 0
  %835 = vperm.xlu0 %834, %v685
  %v836 = vpop.permute.xlu0 %835
  %839 = vset.pattern.permute.xlu0 0
  %840 = vperm.xlu0 %839, %v686
  %v841 = vpop.permute.xlu0 %840
  %844 = vset.pattern.permute.xlu0 0
  %845 = vperm.xlu0 %844, %v687
  %v846 = vpop.permute.xlu0 %845
  %849 = vset.pattern.permute.xlu0 0
  %850 = vperm.xlu0 %849, %v688
  %v851 = vpop.permute.xlu0 %850
  %854 = vset.pattern.permute.xlu0 0
  %855 = vperm.xlu0 %854, %v689
  %v856 = vpop.permute.xlu0 %855
  %859 = vset.pattern.permute.xlu0 0
  %860 = vperm.xlu0 %859, %v690
  %v861 = vpop.permute.xlu0 %860
  %864 = vset.pattern.permute.xlu0 0
  %865 = vperm.xlu0 %864, %v691
  %v866 = vpop.permute.xlu0 %865
  %869 = vset.pattern.permute.xlu0 0
  %870 = vperm.xlu0 %869, %v692
  %v871 = vpop.permute.xlu0 %870
  %v873 = vmul.f32 %v273, %v801
  %v874 = vmul.f32 %v274, %v801
  %v875 = vmul.f32 %v275, %v801
  %v876 = vmul.f32 %v276, %v801
  %v877 = vmul.f32 %v277, %v801
  %v878 = vmul.f32 %v278, %v801
  %v879 = vmul.f32 %v279, %v801
  %v880 = vmul.f32 %v280, %v806
  %v881 = vmul.f32 %v281, %v806
  %v882 = vmul.f32 %v282, %v806
  %v883 = vmul.f32 %v283, %v806
  %v884 = vmul.f32 %v284, %v806
  %v885 = vmul.f32 %v285, %v806
  %v886 = vmul.f32 %v286, %v806
  %v887 = vmul.f32 %v287, %v811
  %v888 = vmul.f32 %v288, %v811
  %v889 = vmul.f32 %v289, %v811
  %v890 = vmul.f32 %v290, %v811
  %v891 = vmul.f32 %v291, %v811
  %v892 = vmul.f32 %v292, %v811
  %v893 = vmul.f32 %v293, %v811
  %v894 = vmul.f32 %v294, %v816
  %v895 = vmul.f32 %v295, %v816
  %v896 = vmul.f32 %v296, %v816
  %v897 = vmul.f32 %v297, %v816
  %v898 = vmul.f32 %v298, %v816
  %v899 = vmul.f32 %v299, %v816
  %v900 = vmul.f32 %v300, %v816
  %v901 = vmul.f32 %v301, %v821
  %v902 = vmul.f32 %v302, %v821
  %v903 = vmul.f32 %v303, %v821
  %v904 = vmul.f32 %v304, %v821
  %v905 = vmul.f32 %v305, %v821
  %v906 = vmul.f32 %v306, %v821
  %v907 = vmul.f32 %v307, %v821
  %v908 = vmul.f32 %v308, %v826
  %v909 = vmul.f32 %v309, %v826
  %v910 = vmul.f32 %v310, %v826
  %v911 = vmul.f32 %v311, %v826
  %v912 = vmul.f32 %v312, %v826
  %v913 = vmul.f32 %v313, %v826
  %v914 = vmul.f32 %v314, %v826
  %v915 = vmul.f32 %v315, %v831
  %v916 = vmul.f32 %v316, %v831
  %v917 = vmul.f32 %v317, %v831
  %v918 = vmul.f32 %v318, %v831
  %v919 = vmul.f32 %v319, %v831
  %v920 = vmul.f32 %v320, %v831
  %v921 = vmul.f32 %v321, %v831
  %v922 = vmul.f32 %v322, %v836
  %v923 = vmul.f32 %v323, %v836
  %v924 = vmul.f32 %v324, %v836
  %v925 = vmul.f32 %v325, %v836
  %v926 = vmul.f32 %v326, %v836
  %v927 = vmul.f32 %v327, %v836
  %v928 = vmul.f32 %v328, %v836
  %v929 = vmul.f32 %v329, %v841
  %v930 = vmul.f32 %v330, %v841
  %v931 = vmul.f32 %v331, %v841
  %v932 = vmul.f32 %v332, %v841
  %v933 = vmul.f32 %v333, %v841
  %v934 = vmul.f32 %v334, %v841
  %v935 = vmul.f32 %v335, %v841
  %v936 = vmul.f32 %v336, %v846
  %v937 = vmul.f32 %v337, %v846
  %v938 = vmul.f32 %v338, %v846
  %v939 = vmul.f32 %v339, %v846
  %v940 = vmul.f32 %v340, %v846
  %v941 = vmul.f32 %v341, %v846
  %v942 = vmul.f32 %v342, %v846
  %v943 = vmul.f32 %v343, %v851
  %v944 = vmul.f32 %v344, %v851
  %v945 = vmul.f32 %v345, %v851
  %v946 = vmul.f32 %v346, %v851
  %v947 = vmul.f32 %v347, %v851
  %v948 = vmul.f32 %v348, %v851
  %v949 = vmul.f32 %v349, %v851
  %v950 = vmul.f32 %v350, %v856
  %v951 = vmul.f32 %v351, %v856
  %v952 = vmul.f32 %v352, %v856
  %v953 = vmul.f32 %v353, %v856
  %v954 = vmul.f32 %v354, %v856
  %v955 = vmul.f32 %v355, %v856
  %v956 = vmul.f32 %v356, %v856
  %v957 = vmul.f32 %v357, %v861
  %v958 = vmul.f32 %v358, %v861
  %v959 = vmul.f32 %v359, %v861
  %v960 = vmul.f32 %v360, %v861
  %v961 = vmul.f32 %v361, %v861
  %v962 = vmul.f32 %v362, %v861
  %v963 = vmul.f32 %v363, %v861
  %v964 = vmul.f32 %v364, %v866
  %v965 = vmul.f32 %v365, %v866
  %v966 = vmul.f32 %v366, %v866
  %v967 = vmul.f32 %v367, %v866
  %v968 = vmul.f32 %v368, %v866
  %v969 = vmul.f32 %v369, %v866
  %v970 = vmul.f32 %v370, %v866
  %v971 = vmul.f32 %v371, %v871
  %v972 = vmul.f32 %v372, %v871
  %v973 = vmul.f32 %v373, %v871
  %v974 = vmul.f32 %v374, %v871
  %v975 = vmul.f32 %v375, %v871
  %v976 = vmul.f32 %v376, %v871
  %v977 = vmul.f32 %v377, %v871
  %v978 = vadd.f32 %v693, %v873
  %v979 = vadd.f32 %v694, %v874
  %v980 = vadd.f32 %v695, %v875
  %v981 = vadd.f32 %v696, %v876
  %v982 = vadd.f32 %v697, %v877
  %v983 = vadd.f32 %v698, %v878
  %v984 = vadd.f32 %v699, %v879
  %v985 = vadd.f32 %v700, %v880
  %v986 = vadd.f32 %v701, %v881
  %v987 = vadd.f32 %v702, %v882
  %v988 = vadd.f32 %v703, %v883
  %v989 = vadd.f32 %v704, %v884
  %v990 = vadd.f32 %v705, %v885
  %v991 = vadd.f32 %v706, %v886
  %v992 = vadd.f32 %v707, %v887
  %v993 = vadd.f32 %v708, %v888
  %v994 = vadd.f32 %v709, %v889
  %v995 = vadd.f32 %v710, %v890
  %v996 = vadd.f32 %v711, %v891
  %v997 = vadd.f32 %v712, %v892
  %v998 = vadd.f32 %v713, %v893
  %v999 = vadd.f32 %v714, %v894
  %v1000 = vadd.f32 %v715, %v895
  %v1001 = vadd.f32 %v716, %v896
  %v1002 = vadd.f32 %v717, %v897
  %v1003 = vadd.f32 %v718, %v898
  %v1004 = vadd.f32 %v719, %v899
  %v1005 = vadd.f32 %v720, %v900
  %v1006 = vadd.f32 %v721, %v901
  %v1007 = vadd.f32 %v722, %v902
  %v1008 = vadd.f32 %v723, %v903
  %v1009 = vadd.f32 %v724, %v904
  %v1010 = vadd.f32 %v725, %v905
  %v1011 = vadd.f32 %v726, %v906
  %v1012 = vadd.f32 %v727, %v907
  %v1013 = vadd.f32 %v728, %v908
  %v1014 = vadd.f32 %v729, %v909
  %v1015 = vadd.f32 %v730, %v910
  %v1016 = vadd.f32 %v731, %v911
  %v1017 = vadd.f32 %v732, %v912
  %v1018 = vadd.f32 %v733, %v913
  %v1019 = vadd.f32 %v734, %v914
  %v1020 = vadd.f32 %v735, %v915
  %v1021 = vadd.f32 %v736, %v916
  %v1022 = vadd.f32 %v737, %v917
  %v1023 = vadd.f32 %v738, %v918
  %v1024 = vadd.f32 %v739, %v919
  %v1025 = vadd.f32 %v740, %v920
  %v1026 = vadd.f32 %v741, %v921
  %v1027 = vadd.f32 %v742, %v922
  %v1028 = vadd.f32 %v743, %v923
  %v1029 = vadd.f32 %v744, %v924
  %v1030 = vadd.f32 %v745, %v925
  %v1031 = vadd.f32 %v746, %v926
  %v1032 = vadd.f32 %v747, %v927
  %v1033 = vadd.f32 %v748, %v928
  %v1034 = vadd.f32 %v749, %v929
  %v1035 = vadd.f32 %v750, %v930
  %v1036 = vadd.f32 %v751, %v931
  %v1037 = vadd.f32 %v752, %v932
  %v1038 = vadd.f32 %v753, %v933
  %v1039 = vadd.f32 %v754, %v934
  %v1040 = vadd.f32 %v755, %v935
  %v1041 = vadd.f32 %v756, %v936
  %v1042 = vadd.f32 %v757, %v937
  %v1043 = vadd.f32 %v758, %v938
  %v1044 = vadd.f32 %v759, %v939
  %v1045 = vadd.f32 %v760, %v940
  %v1046 = vadd.f32 %v761, %v941
  %v1047 = vadd.f32 %v762, %v942
  %v1048 = vadd.f32 %v763, %v943
  %v1049 = vadd.f32 %v764, %v944
  %v1050 = vadd.f32 %v765, %v945
  %v1051 = vadd.f32 %v766, %v946
  %v1052 = vadd.f32 %v767, %v947
  %v1053 = vadd.f32 %v768, %v948
  %v1054 = vadd.f32 %v769, %v949
  %v1055 = vadd.f32 %v770, %v950
  %v1056 = vadd.f32 %v771, %v951
  %v1057 = vadd.f32 %v772, %v952
  %v1058 = vadd.f32 %v773, %v953
  %v1059 = vadd.f32 %v774, %v954
  %v1060 = vadd.f32 %v775, %v955
  %v1061 = vadd.f32 %v776, %v956
  %v1062 = vadd.f32 %v777, %v957
  %v1063 = vadd.f32 %v778, %v958
  %v1064 = vadd.f32 %v779, %v959
  %v1065 = vadd.f32 %v780, %v960
  %v1066 = vadd.f32 %v781, %v961
  %v1067 = vadd.f32 %v782, %v962
  %v1068 = vadd.f32 %v783, %v963
  %v1069 = vadd.f32 %v784, %v964
  %v1070 = vadd.f32 %v785, %v965
  %v1071 = vadd.f32 %v786, %v966
  %v1072 = vadd.f32 %v787, %v967
  %v1073 = vadd.f32 %v788, %v968
  %v1074 = vadd.f32 %v789, %v969
  %v1075 = vadd.f32 %v790, %v970
  %v1076 = vadd.f32 %v791, %v971
  %v1077 = vadd.f32 %v792, %v972
  %v1078 = vadd.f32 %v793, %v973
  %v1079 = vadd.f32 %v794, %v974
  %v1080 = vadd.f32 %v795, %v975
  %v1081 = vadd.f32 %v796, %v976
  %v1082 = vadd.f32 %v797, %v977
  %v1083 = vld [vmem:[%s3] sm:$0xff]
  %v1084 = vld [vmem:[%s3 + $0x8] sm:$0xff]
  %v1085 = vld [vmem:[%s3 + $0x10] sm:$0xff]
  %v1086 = vld [vmem:[%s3 + $0x18] sm:$0xff]
  %v1087 = vld [vmem:[%s3 + $0x20] sm:$0xff]
  %v1088 = vld [vmem:[%s3 + $0x28] sm:$0xff]
  %v1089 = vld [vmem:[%s3 + $0x30] sm:$0xff]
  %v1090 = vld [vmem:[%s3 + $0x38] sm:$0xff]
  %v1091 = vld [vmem:[%s3 + $0x40] sm:$0xff]
  %v1092 = vld [vmem:[%s3 + $0x48] sm:$0xff]
  %v1093 = vld [vmem:[%s3 + $0x50] sm:$0xff]
  %v1094 = vld [vmem:[%s3 + $0x58] sm:$0xff]
  %v1095 = vld [vmem:[%s3 + $0x60] sm:$0xff]
  %v1096 = vld [vmem:[%s3 + $0x68] sm:$0xff]
  %v1097 = vld [vmem:[%s3 + $0x70] sm:$0xff]
  %1099 = vset.pattern.permute.xlu0 0
  %1100 = vperm.xlu0 %1099, %v1083
  %v1101 = vpop.permute.xlu0 %1100
  %1104 = vset.pattern.permute.xlu0 0
  %1105 = vperm.xlu0 %1104, %v1084
  %v1106 = vpop.permute.xlu0 %1105
  %1109 = vset.pattern.permute.xlu0 0
  %1110 = vperm.xlu0 %1109, %v1085
  %v1111 = vpop.permute.xlu0 %1110
  %1114 = vset.pattern.permute.xlu0 0
  %1115 = vperm.xlu0 %1114, %v1086
  %v1116 = vpop.permute.xlu0 %1115
  %1119 = vset.pattern.permute.xlu0 0
  %1120 = vperm.xlu0 %1119, %v1087
  %v1121 = vpop.permute.xlu0 %1120
  %1124 = vset.pattern.permute.xlu0 0
  %1125 = vperm.xlu0 %1124, %v1088
  %v1126 = vpop.permute.xlu0 %1125
  %1129 = vset.pattern.permute.xlu0 0
  %1130 = vperm.xlu0 %1129, %v1089
  %v1131 = vpop.permute.xlu0 %1130
  %1134 = vset.pattern.permute.xlu0 0
  %1135 = vperm.xlu0 %1134, %v1090
  %v1136 = vpop.permute.xlu0 %1135
  %1139 = vset.pattern.permute.xlu0 0
  %1140 = vperm.xlu0 %1139, %v1091
  %v1141 = vpop.permute.xlu0 %1140
  %1144 = vset.pattern.permute.xlu0 0
  %1145 = vperm.xlu0 %1144, %v1092
  %v1146 = vpop.permute.xlu0 %1145
  %1149 = vset.pattern.permute.xlu0 0
  %1150 = vperm.xlu0 %1149, %v1093
  %v1151 = vpop.permute.xlu0 %1150
  %1154 = vset.pattern.permute.xlu0 0
  %1155 = vperm.xlu0 %1154, %v1094
  %v1156 = vpop.permute.xlu0 %1155
  %1159 = vset.pattern.permute.xlu0 0
  %1160 = vperm.xlu0 %1159, %v1095
  %v1161 = vpop.permute.xlu0 %1160
  %1164 = vset.pattern.permute.xlu0 0
  %1165 = vperm.xlu0 %1164, %v1096
  %v1166 = vpop.permute.xlu0 %1165
  %1169 = vset.pattern.permute.xlu0 0
  %1170 = vperm.xlu0 %1169, %v1097
  %v1171 = vpop.permute.xlu0 %1170
  %v1173 = vadd.f32 %v978, %v1101
  %v1174 = vadd.f32 %v979, %v1101
  %v1175 = vadd.f32 %v980, %v1101
  %v1176 = vadd.f32 %v981, %v1101
  %v1177 = vadd.f32 %v982, %v1101
  %v1178 = vadd.f32 %v983, %v1101
  %v1179 = vadd.f32 %v984, %v1101
  %v1180 = vadd.f32 %v985, %v1106
  %v1181 = vadd.f32 %v986, %v1106
  %v1182 = vadd.f32 %v987, %v1106
  %v1183 = vadd.f32 %v988, %v1106
  %v1184 = vadd.f32 %v989, %v1106
  %v1185 = vadd.f32 %v990, %v1106
  %v1186 = vadd.f32 %v991, %v1106
  %v1187 = vadd.f32 %v992, %v1111
  %v1188 = vadd.f32 %v993, %v1111
  %v1189 = vadd.f32 %v994, %v1111
  %v1190 = vadd.f32 %v995, %v1111
  %v1191 = vadd.f32 %v996, %v1111
  %v1192 = vadd.f32 %v997, %v1111
  %v1193 = vadd.f32 %v998, %v1111
  %v1194 = vadd.f32 %v999, %v1116
  %v1195 = vadd.f32 %v1000, %v1116
  %v1196 = vadd.f32 %v1001, %v1116
  %v1197 = vadd.f32 %v1002, %v1116
  %v1198 = vadd.f32 %v1003, %v1116
  %v1199 = vadd.f32 %v1004, %v1116
  %v1200 = vadd.f32 %v1005, %v1116
  %v1201 = vadd.f32 %v1006, %v1121
  %v1202 = vadd.f32 %v1007, %v1121
  %v1203 = vadd.f32 %v1008, %v1121
  %v1204 = vadd.f32 %v1009, %v1121
  %v1205 = vadd.f32 %v1010, %v1121
  %v1206 = vadd.f32 %v1011, %v1121
  %v1207 = vadd.f32 %v1012, %v1121
  %v1208 = vadd.f32 %v1013, %v1126
  %v1209 = vadd.f32 %v1014, %v1126
  %v1210 = vadd.f32 %v1015, %v1126
  %v1211 = vadd.f32 %v1016, %v1126
  %v1212 = vadd.f32 %v1017, %v1126
  %v1213 = vadd.f32 %v1018, %v1126
  %v1214 = vadd.f32 %v1019, %v1126
  %v1215 = vadd.f32 %v1020, %v1131
  %v1216 = vadd.f32 %v1021, %v1131
  %v1217 = vadd.f32 %v1022, %v1131
  %v1218 = vadd.f32 %v1023, %v1131
  %v1219 = vadd.f32 %v1024, %v1131
  %v1220 = vadd.f32 %v1025, %v1131
  %v1221 = vadd.f32 %v1026, %v1131
  %v1222 = vadd.f32 %v1027, %v1136
  %v1223 = vadd.f32 %v1028, %v1136
  %v1224 = vadd.f32 %v1029, %v1136
  %v1225 = vadd.f32 %v1030, %v1136
  %v1226 = vadd.f32 %v1031, %v1136
  %v1227 = vadd.f32 %v1032, %v1136
  %v1228 = vadd.f32 %v1033, %v1136
  %v1229 = vadd.f32 %v1034, %v1141
  %v1230 = vadd.f32 %v1035, %v1141
  %v1231 = vadd.f32 %v1036, %v1141
  %v1232 = vadd.f32 %v1037, %v1141
  %v1233 = vadd.f32 %v1038, %v1141
  %v1234 = vadd.f32 %v1039, %v1141
  %v1235 = vadd.f32 %v1040, %v1141
  %v1236 = vadd.f32 %v1041, %v1146
  %v1237 = vadd.f32 %v1042, %v1146
  %v1238 = vadd.f32 %v1043, %v1146
  %v1239 = vadd.f32 %v1044, %v1146
  %v1240 = vadd.f32 %v1045, %v1146
  %v1241 = vadd.f32 %v1046, %v1146
  %v1242 = vadd.f32 %v1047, %v1146
  %v1243 = vadd.f32 %v1048, %v1151
  %v1244 = vadd.f32 %v1049, %v1151
  %v1245 = vadd.f32 %v1050, %v1151
  %v1246 = vadd.f32 %v1051, %v1151
  %v1247 = vadd.f32 %v1052, %v1151
  %v1248 = vadd.f32 %v1053, %v1151
  %v1249 = vadd.f32 %v1054, %v1151
  %v1250 = vadd.f32 %v1055, %v1156
  %v1251 = vadd.f32 %v1056, %v1156
  %v1252 = vadd.f32 %v1057, %v1156
  %v1253 = vadd.f32 %v1058, %v1156
  %v1254 = vadd.f32 %v1059, %v1156
  %v1255 = vadd.f32 %v1060, %v1156
  %v1256 = vadd.f32 %v1061, %v1156
  %v1257 = vadd.f32 %v1062, %v1161
  %v1258 = vadd.f32 %v1063, %v1161
  %v1259 = vadd.f32 %v1064, %v1161
  %v1260 = vadd.f32 %v1065, %v1161
  %v1261 = vadd.f32 %v1066, %v1161
  %v1262 = vadd.f32 %v1067, %v1161
  %v1263 = vadd.f32 %v1068, %v1161
  %v1264 = vadd.f32 %v1069, %v1166
  %v1265 = vadd.f32 %v1070, %v1166
  %v1266 = vadd.f32 %v1071, %v1166
  %v1267 = vadd.f32 %v1072, %v1166
  %v1268 = vadd.f32 %v1073, %v1166
  %v1269 = vadd.f32 %v1074, %v1166
  %v1270 = vadd.f32 %v1075, %v1166
  %v1271 = vadd.f32 %v1076, %v1171
  %v1272 = vadd.f32 %v1077, %v1171
  %v1273 = vadd.f32 %v1078, %v1171
  %v1274 = vadd.f32 %v1079, %v1171
  %v1275 = vadd.f32 %v1080, %v1171
  %v1276 = vadd.f32 %v1081, %v1171
  %v1277 = vadd.f32 %v1082, %v1171
  %v1278 = vmax.f32 %v1173, 0.0
  %v1279 = vmax.f32 %v1174, 0.0
  %v1280 = vmax.f32 %v1175, 0.0
  %v1281 = vmax.f32 %v1176, 0.0
  %v1282 = vmax.f32 %v1177, 0.0
  %v1283 = vmax.f32 %v1178, 0.0
  %v1284 = vmax.f32 %v1179, 0.0
  %v1285 = vmax.f32 %v1180, 0.0
  %v1286 = vmax.f32 %v1181, 0.0
  %v1287 = vmax.f32 %v1182, 0.0
  %v1288 = vmax.f32 %v1183, 0.0
  %v1289 = vmax.f32 %v1184, 0.0
  %v1290 = vmax.f32 %v1185, 0.0
  %v1291 = vmax.f32 %v1186, 0.0
  %v1292 = vmax.f32 %v1187, 0.0
  %v1293 = vmax.f32 %v1188, 0.0
  %v1294 = vmax.f32 %v1189, 0.0
  %v1295 = vmax.f32 %v1190, 0.0
  %v1296 = vmax.f32 %v1191, 0.0
  %v1297 = vmax.f32 %v1192, 0.0
  %v1298 = vmax.f32 %v1193, 0.0
  %v1299 = vmax.f32 %v1194, 0.0
  %v1300 = vmax.f32 %v1195, 0.0
  %v1301 = vmax.f32 %v1196, 0.0
  %v1302 = vmax.f32 %v1197, 0.0
  %v1303 = vmax.f32 %v1198, 0.0
  %v1304 = vmax.f32 %v1199, 0.0
  %v1305 = vmax.f32 %v1200, 0.0
  %v1306 = vmax.f32 %v1201, 0.0
  %v1307 = vmax.f32 %v1202, 0.0
  %v1308 = vmax.f32 %v1203, 0.0
  %v1309 = vmax.f32 %v1204, 0.0
  %v1310 = vmax.f32 %v1205, 0.0
  %v1311 = vmax.f32 %v1206, 0.0
  %v1312 = vmax.f32 %v1207, 0.0
  %v1313 = vmax.f32 %v1208, 0.0
  %v1314 = vmax.f32 %v1209, 0.0
  %v1315 = vmax.f32 %v1210, 0.0
  %v1316 = vmax.f32 %v1211, 0.0
  %v1317 = vmax.f32 %v1212, 0.0
  %v1318 = vmax.f32 %v1213, 0.0
  %v1319 = vmax.f32 %v1214, 0.0
  %v1320 = vmax.f32 %v1215, 0.0
  %v1321 = vmax.f32 %v1216, 0.0
  %v1322 = vmax.f32 %v1217, 0.0
  %v1323 = vmax.f32 %v1218, 0.0
  %v1324 = vmax.f32 %v1219, 0.0
  %v1325 = vmax.f32 %v1220, 0.0
  %v1326 = vmax.f32 %v1221, 0.0
  %v1327 = vmax.f32 %v1222, 0.0
  %v1328 = vmax.f32 %v1223, 0.0
  %v1329 = vmax.f32 %v1224, 0.0
  %v1330 = vmax.f32 %v1225, 0.0
  %v1331 = vmax.f32 %v1226, 0.0
  %v1332 = vmax.f32 %v1227, 0.0
  %v1333 = vmax.f32 %v1228, 0.0
  %v1334 = vmax.f32 %v1229, 0.0
  %v1335 = vmax.f32 %v1230, 0.0
  %v1336 = vmax.f32 %v1231, 0.0
  %v1337 = vmax.f32 %v1232, 0.0
  %v1338 = vmax.f32 %v1233, 0.0
  %v1339 = vmax.f32 %v1234, 0.0
  %v1340 = vmax.f32 %v1235, 0.0
  %v1341 = vmax.f32 %v1236, 0.0
  %v1342 = vmax.f32 %v1237, 0.0
  %v1343 = vmax.f32 %v1238, 0.0
  %v1344 = vmax.f32 %v1239, 0.0
  %v1345 = vmax.f32 %v1240, 0.0
  %v1346 = vmax.f32 %v1241, 0.0
  %v1347 = vmax.f32 %v1242, 0.0
  %v1348 = vmax.f32 %v1243, 0.0
  %v1349 = vmax.f32 %v1244, 0.0
  %v1350 = vmax.f32 %v1245, 0.0
  %v1351 = vmax.f32 %v1246, 0.0
  %v1352 = vmax.f32 %v1247, 0.0
  %v1353 = vmax.f32 %v1248, 0.0
  %v1354 = vmax.f32 %v1249, 0.0
  %v1355 = vmax.f32 %v1250, 0.0
  %v1356 = vmax.f32 %v1251, 0.0
  %v1357 = vmax.f32 %v1252, 0.0
  %v1358 = vmax.f32 %v1253, 0.0
  %v1359 = vmax.f32 %v1254, 0.0
  %v1360 = vmax.f32 %v1255, 0.0
  %v1361 = vmax.f32 %v1256, 0.0
  %v1362 = vmax.f32 %v1257, 0.0
  %v1363 = vmax.f32 %v1258, 0.0
  %v1364 = vmax.f32 %v1259, 0.0
  %v1365 = vmax.f32 %v1260, 0.0
  %v1366 = vmax.f32 %v1261, 0.0
  %v1367 = vmax.f32 %v1262, 0.0
  %v1368 = vmax.f32 %v1263, 0.0
  %v1369 = vmax.f32 %v1264, 0.0
  %v1370 = vmax.f32 %v1265, 0.0
  %v1371 = vmax.f32 %v1266, 0.0
  %v1372 = vmax.f32 %v1267, 0.0
  %v1373 = vmax.f32 %v1268, 0.0
  %v1374 = vmax.f32 %v1269, 0.0
  %v1375 = vmax.f32 %v1270, 0.0
  %v1376 = vmax.f32 %v1271, 0.0
  %v1377 = vmax.f32 %v1272, 0.0
  %v1378 = vmax.f32 %v1273, 0.0
  %v1379 = vmax.f32 %v1274, 0.0
  %v1380 = vmax.f32 %v1275, 0.0
  %v1381 = vmax.f32 %v1276, 0.0
  %v1382 = vmax.f32 %v1277, 0.0
  %1383 = vst [vmem:[%s4] sm:$0xff] %v1278
  %1384 = vst [vmem:[%s4 + $0x8] sm:$0xff] %v1279
  %1385 = vst [vmem:[%s4 + $0x10] sm:$0xff] %v1280
  %1386 = vst [vmem:[%s4 + $0x18] sm:$0xff] %v1281
  %1387 = vst [vmem:[%s4 + $0x20] sm:$0xff] %v1282
  %1388 = vst [vmem:[%s4 + $0x28] sm:$0xff] %v1283
  %1389 = vst.msk [vmem:[%s4 + $0x30] sm:$0xff] %vm127, %v1284
  %1390 = vst [vmem:[%s4 + $0x38] sm:$0xff] %v1285
  %1391 = vst [vmem:[%s4 + $0x40] sm:$0xff] %v1286
  %1392 = vst [vmem:[%s4 + $0x48] sm:$0xff] %v1287
  %1393 = vst [vmem:[%s4 + $0x50] sm:$0xff] %v1288
  %1394 = vst [vmem:[%s4 + $0x58] sm:$0xff] %v1289
  %1395 = vst [vmem:[%s4 + $0x60] sm:$0xff] %v1290
  %1396 = vst.msk [vmem:[%s4 + $0x68] sm:$0xff] %vm127, %v1291
  %1397 = vst [vmem:[%s4 + $0x70] sm:$0xff] %v1292
  %1398 = vst [vmem:[%s4 + $0x78] sm:$0xff] %v1293
  %1399 = vst [vmem:[%s4 + $0x80] sm:$0xff] %v1294
  %1400 = vst [vmem:[%s4 + $0x88] sm:$0xff] %v1295
  %1401 = vst [vmem:[%s4 + $0x90] sm:$0xff] %v1296
  %1402 = vst [vmem:[%s4 + $0x98] sm:$0xff] %v1297
  %1403 = vst.msk [vmem:[%s4 + $0xa0] sm:$0xff] %vm127, %v1298
  %1404 = vst [vmem:[%s4 + $0xa8] sm:$0xff] %v1299
  %1405 = vst [vmem:[%s4 + $0xb0] sm:$0xff] %v1300
  %1406 = vst [vmem:[%s4 + $0xb8] sm:$0xff] %v1301
  %1407 = vst [vmem:[%s4 + $0xc0] sm:$0xff] %v1302
  %1408 = vst [vmem:[%s4 + $0xc8] sm:$0xff] %v1303
  %1409 = vst [vmem:[%s4 + $0xd0] sm:$0xff] %v1304
  %1410 = vst.msk [vmem:[%s4 + $0xd8] sm:$0xff] %vm127, %v1305
  %1411 = vst [vmem:[%s4 + $0xe0] sm:$0xff] %v1306
  %1412 = vst [vmem:[%s4 + $0xe8] sm:$0xff] %v1307
  %1413 = vst [vmem:[%s4 + $0xf0] sm:$0xff] %v1308
  %1414 = vst [vmem:[%s4 + $0xf8] sm:$0xff] %v1309
  %1415 = vst [vmem:[%s4 + $0x100] sm:$0xff] %v1310
  %1416 = vst [vmem:[%s4 + $0x108] sm:$0xff] %v1311
  %1417 = vst.msk [vmem:[%s4 + $0x110] sm:$0xff] %vm127, %v1312
  %1418 = vst [vmem:[%s4 + $0x118] sm:$0xff] %v1313
  %1419 = vst [vmem:[%s4 + $0x120] sm:$0xff] %v1314
  %1420 = vst [vmem:[%s4 + $0x128] sm:$0xff] %v1315
  %1421 = vst [vmem:[%s4 + $0x130] sm:$0xff] %v1316
  %1422 = vst [vmem:[%s4 + $0x138] sm:$0xff] %v1317
  %1423 = vst [vmem:[%s4 + $0x140] sm:$0xff] %v1318
  %1424 = vst.msk [vmem:[%s4 + $0x148] sm:$0xff] %vm127, %v1319
  %1425 = vst [vmem:[%s4 + $0x150] sm:$0xff] %v1320
  %1426 = vst [vmem:[%s4 + $0x158] sm:$0xff] %v1321
  %1427 = vst [vmem:[%s4 + $0x160] sm:$0xff] %v1322
  %1428 = vst [vmem:[%s4 + $0x168] sm:$0xff] %v1323
  %1429 = vst [vmem:[%s4 + $0x170] sm:$0xff] %v1324
  %1430 = vst [vmem:[%s4 + $0x178] sm:$0xff] %v1325
  %1431 = vst.msk [vmem:[%s4 + $0x180] sm:$0xff] %vm127, %v1326
  %1432 = vst [vmem:[%s4 + $0x188] sm:$0xff] %v1327
  %1433 = vst [vmem:[%s4 + $0x190] sm:$0xff] %v1328
  %1434 = vst [vmem:[%s4 + $0x198] sm:$0xff] %v1329
  %1435 = vst [vmem:[%s4 + $0x1a0] sm:$0xff] %v1330
  %1436 = vst [vmem:[%s4 + $0x1a8] sm:$0xff] %v1331
  %1437 = vst [vmem:[%s4 + $0x1b0] sm:$0xff] %v1332
  %1438 = vst.msk [vmem:[%s4 + $0x1b8] sm:$0xff] %vm127, %v1333
  %1439 = vst [vmem:[%s4 + $0x1c0] sm:$0xff] %v1334
  %1440 = vst [vmem:[%s4 + $0x1c8] sm:$0xff] %v1335
  %1441 = vst [vmem:[%s4 + $0x1d0] sm:$0xff] %v1336
  %1442 = vst [vmem:[%s4 + $0x1d8] sm:$0xff] %v1337
  %1443 = vst [vmem:[%s4 + $0x1e0] sm:$0xff] %v1338
  %1444 = vst [vmem:[%s4 + $0x1e8] sm:$0xff] %v1339
  %1445 = vst.msk [vmem:[%s4 + $0x1f0] sm:$0xff] %vm127, %v1340
  %1446 = vst [vmem:[%s4 + $0x1f8] sm:$0xff] %v1341
  %1447 = vst [vmem:[%s4 + $0x200] sm:$0xff] %v1342
  %1448 = vst [vmem:[%s4 + $0x208] sm:$0xff] %v1343
  %1449 = vst [vmem:[%s4 + $0x210] sm:$0xff] %v1344
  %1450 = vst [vmem:[%s4 + $0x218] sm:$0xff] %v1345
  %1451 = vst [vmem:[%s4 + $0x220] sm:$0xff] %v1346
  %1452 = vst.msk [vmem:[%s4 + $0x228] sm:$0xff] %vm127, %v1347
  %1453 = vst [vmem:[%s4 + $0x230] sm:$0xff] %v1348
  %1454 = vst [vmem:[%s4 + $0x238] sm:$0xff] %v1349
  %1455 = vst [vmem:[%s4 + $0x240] sm:$0xff] %v1350
  %1456 = vst [vmem:[%s4 + $0x248] sm:$0xff] %v1351
  %1457 = vst [vmem:[%s4 + $0x250] sm:$0xff] %v1352
  %1458 = vst [vmem:[%s4 + $0x258] sm:$0xff] %v1353
  %1459 = vst.msk [vmem:[%s4 + $0x260] sm:$0xff] %vm127, %v1354
  %1460 = vst [vmem:[%s4 + $0x268] sm:$0xff] %v1355
  %1461 = vst [vmem:[%s4 + $0x270] sm:$0xff] %v1356
  %1462 = vst [vmem:[%s4 + $0x278] sm:$0xff] %v1357
  %1463 = vst [vmem:[%s4 + $0x280] sm:$0xff] %v1358
  %1464 = vst [vmem:[%s4 + $0x288] sm:$0xff] %v1359
  %1465 = vst [vmem:[%s4 + $0x290] sm:$0xff] %v1360
  %1466 = vst.msk [vmem:[%s4 + $0x298] sm:$0xff] %vm127, %v1361
  %1467 = vst [vmem:[%s4 + $0x2a0] sm:$0xff] %v1362
  %1468 = vst [vmem:[%s4 + $0x2a8] sm:$0xff] %v1363
  %1469 = vst [vmem:[%s4 + $0x2b0] sm:$0xff] %v1364
  %1470 = vst [vmem:[%s4 + $0x2b8] sm:$0xff] %v1365
  %1471 = vst [vmem:[%s4 + $0x2c0] sm:$0xff] %v1366
  %1472 = vst [vmem:[%s4 + $0x2c8] sm:$0xff] %v1367
  %1473 = vst.msk [vmem:[%s4 + $0x2d0] sm:$0xff] %vm127, %v1368
  %1474 = vst [vmem:[%s4 + $0x2d8] sm:$0xff] %v1369
  %1475 = vst [vmem:[%s4 + $0x2e0] sm:$0xff] %v1370
  %1476 = vst [vmem:[%s4 + $0x2e8] sm:$0xff] %v1371
  %1477 = vst [vmem:[%s4 + $0x2f0] sm:$0xff] %v1372
  %1478 = vst [vmem:[%s4 + $0x2f8] sm:$0xff] %v1373
  %1479 = vst [vmem:[%s4 + $0x300] sm:$0xff] %v1374
  %1480 = vst.msk [vmem:[%s4 + $0x308] sm:$0xff] %vm127, %v1375
  %1481 = vst [vmem:[%s4 + $0x310] sm:$0xff] %v1376
  %1482 = vst [vmem:[%s4 + $0x318] sm:$0xff] %v1377
  %1483 = vst [vmem:[%s4 + $0x320] sm:$0xff] %v1378
  %1484 = vst [vmem:[%s4 + $0x328] sm:$0xff] %v1379
  %1485 = vst [vmem:[%s4 + $0x330] sm:$0xff] %v1380
  %1486 = vst [vmem:[%s4 + $0x338] sm:$0xff] %v1381
  %1487 = vst.msk [vmem:[%s4 + $0x340] sm:$0xff] %vm127, %v1382
  // Predicated region
  $region18: #{_pallas_bn_add_relu.1} parent=0 // pred_check
    _
  $region19: #{_pallas_bn_add_relu.1} parent=0 // pred_check_branch
    %1489 = sbr.rel (0) target = $region21
  $region20: #{_pallas_bn_add_relu.1} parent=0 // pred_region
    _
  $region21: #{_pallas_bn_add_relu.1} parent=0 // pred_fallthru
    _
  // Predicated region
  $region22: #{_pallas_bn_add_relu.1} parent=0 // pred_check
    _
  $region23: #{_pallas_bn_add_relu.1} parent=0 // pred_check_branch
    %1491 = sbr.rel (0) target = $region25
  $region24: #{_pallas_bn_add_relu.1} parent=0 // pred_region
    _
  $region25: #{_pallas_bn_add_relu.1} parent=0 // pred_fallthru
    _

</llo_original>
